<compile_context>
chip_gen: v6e
topology: v6e:2x2x1
jax: 0.10.0
libtpu: 0.0.40
codegen_flags: <defaults>
</compile_context>

<pallas_src>
import functools

import jax
import jax.numpy as jnp
from jax.experimental import pallas as pl
from jax.experimental.pallas import tpu as pltpu
from jax.scipy.linalg import block_diag as _block_diag

_LN_EPS = 1e-5  # match torch.nn.LayerNorm default


def cgb_kernel(x_ref, y_ref,
               w_in_x_ref, w_in_y_ref, m_ref,
               g_ln_ref, b_ln_ref,
               w1_ref, b1_ref, wg_ref, bg_ref, w2_ref, b2_ref,
               ox_ref, oy_ref, *, pc):
    f32 = jnp.float32
    bf16 = jnp.bfloat16

    # Fused 1x1-conv input projections of both branches / all packed tokens.
    # Activation layout: [x-branch of P tokens (pc lanes) | y-branch (pc lanes)].
    a = (jnp.dot(x_ref[...].astype(bf16), w_in_x_ref[...],
                 preferred_element_type=f32)
         + jnp.dot(y_ref[...].astype(bf16), w_in_y_ref[...],
                   preferred_element_type=f32))            # (rows, 2*pc) f32
    shortcut = a

    # Per-token, per-branch LayerNorm.  m_ref is a block-diagonal averaging
    # matrix (1/C inside every C-lane segment), so segmented mean / variance
    # are two cheap MXU matmuls (bf16 inputs, f32 accumulation — ~2^-9
    # relative error on the stats, consistent with bf16 weights elsewhere).
    mu = jnp.dot(a.astype(bf16), m_ref[...], preferred_element_type=f32)
    cen = a - mu
    var = jnp.dot(jnp.square(cen).astype(bf16), m_ref[...],
                  preferred_element_type=f32)
    ln = cen * jax.lax.rsqrt(var + _LN_EPS) * g_ln_ref[...] + b_ln_ref[...]

    # Dense + GELU (both branches, all packed tokens, one 256-wide matmul).
    # TODO(synk): tanh-approx GELU; PyTorch nn.GELU defaults to exact erf.
    v = jax.nn.gelu(jnp.dot(ln.astype(bf16), w1_ref[...],
                            preferred_element_type=f32) + b1_ref[...])

    # Gating signals.  The cross swap (x gated by y's gate and vice versa) is
    # folded into wg's column layout, so `g` is already aligned with `v`.
    g = jnp.dot(v.astype(bf16), wg_ref[...],
                preferred_element_type=f32) + bg_ref[...]
    gated = v * g

    # Output projections + biases + input-projection shortcuts.
    out = (jnp.dot(gated.astype(bf16), w2_ref[...],
                   preferred_element_type=f32)
           + b2_ref[...] + shortcut)

    y2 = out[:, pc:]            # y-branch output (with its residual)
    x2 = out[:, :pc] + y2       # x-branch additionally adds y2 (CGB residual)
    ox_ref[...] = x2.astype(ox_ref.dtype)   # 128-lane dense stores
    oy_ref[...] = y2.astype(oy_ref.dtype)


def make_cgb_params(first_num_channels, num_channels, key):
    """Deterministic synthetic parameter init (no checkpoint load)."""
    C, Cy = num_channels, first_num_channels
    ks = jax.random.split(key, 8)

    def w(k, shape):
        return jax.random.normal(k, shape, jnp.float32) * 0.02

    zeros = jnp.zeros((1, C), jnp.float32)
    ones = jnp.ones((1, C), jnp.float32)
    return dict(
        wx_in=w(ks[0], (C, C)),   # 1x1 conv proj of x
        wy_in=w(ks[1], (Cy, C)),  # 1x1 conv proj of y
        gxx=ones, bxx=zeros,      # LayerNorm(x) scale/shift
        gyy=ones, byy=zeros,      # LayerNorm(y) scale/shift
        w1x=w(ks[2], (C, C)), b1x=zeros,
        w1y=w(ks[3], (C, C)), b1y=zeros,
        wgx=w(ks[4], (C, C)), bgx=ones,   # gating bias init to 1 (MAXIM)
        wgy=w(ks[5], (C, C)), bgy=ones,
        w2x=w(ks[6], (C, C)), b2x=zeros,
        w2y=w(ks[7], (C, C)), b2y=zeros,
    )


_FUSED_ORDER = ("w_in_x", "w_in_y", "m", "g_ln", "b_ln",
                "w1", "b1", "wg", "bg", "w2", "b2")


def fuse_cgb_params(params, pack):
    """Build token-packed, block-diagonal bf16 weights (done once, host side).

    Fused activation layout per row (2*P*C lanes): first P*C lanes = x branch
    of the P packed tokens, last P*C lanes = y branch of the same tokens.
    """
    P = pack
    C = params["w1x"].shape[0]
    Cy = params["wy_in"].shape[0]
    PC = P * C

    def rep(name):                                   # per-token block, P copies
        return _block_diag(*([params[name]] * P))

    def tile_vec(name):                              # (1, C) -> (1, P*C)
        return jnp.tile(params[name], (1, P))

    # Input 1x1 projections: x feeds the first PC output lanes, y the last PC.
    w_in_x = jnp.concatenate(
        [rep("wx_in"), jnp.zeros((PC, PC), jnp.float32)], axis=1)
    w_in_y = jnp.concatenate(
        [jnp.zeros((P * Cy, PC), jnp.float32), rep("wy_in")], axis=1)

    # Segmented-averaging matrix for LayerNorm stats (1/C per C-lane segment).
    m = _block_diag(*([jnp.full((C, C), 1.0 / C, jnp.float32)] * (2 * P)))

    g_ln = jnp.concatenate([tile_vec("gxx"), tile_vec("gyy")], axis=1)
    b_ln = jnp.concatenate([tile_vec("bxx"), tile_vec("byy")], axis=1)

    w1 = _block_diag(rep("w1x"), rep("w1y"))
    b1 = jnp.concatenate([tile_vec("b1x"), tile_vec("b1y")], axis=1)

    # Gating with the cross swap folded into the output columns: the gate
    # consumed by the x branch (first PC lanes) comes from the y branch and
    # vice versa.
    zero = jnp.zeros((PC, PC), jnp.float32)
    wg = jnp.block([[zero, rep("wgx")],
                    [rep("wgy"), zero]])
    bg = jnp.concatenate([tile_vec("bgy"), tile_vec("bgx")], axis=1)

    w2 = _block_diag(rep("w2x"), rep("w2y"))
    b2 = jnp.concatenate([tile_vec("b2x"), tile_vec("b2y")], axis=1)

    bf16 = jnp.bfloat16
    return dict(
        w_in_x=w_in_x.astype(bf16), w_in_y=w_in_y.astype(bf16),
        m=m.astype(bf16),
        g_ln=g_ln, b_ln=b_ln,
        w1=w1.astype(bf16), b1=b1,
        wg=wg.astype(bf16), bg=bg,
        w2=w2.astype(bf16), b2=b2,
    )


def _pick_tile_rows(n_rows, target_rows=1024):
    """Largest multiple-of-8 divisor of n_rows that is <= target_rows
    (~4096 tokens/step), keeping >=2 grid steps when possible so the v7x
    dual TensorCores can both get work."""
    cands = [d for d in range(8, min(n_rows, target_rows) + 1, 8)
             if n_rows % d == 0]
    if not cands:
        return n_rows
    multi = [d for d in cands if n_rows // d >= 2]
    return max(multi) if multi else max(cands)


def cgb_forward(x_nhwc, y_nhwc, params):
    """CGB forward on channel-last (NHWC) inputs — zero layout cost path."""
    N, H, W, Cx = x_nhwc.shape
    Ny, Hy, Wy, Cy = y_nhwc.shape
    assert (N, H, W) == (Ny, Hy, Wy)
    C = params["wx_in"].shape[1]
    assert Cx == params["wx_in"].shape[0]
    assert Cy == params["wy_in"].shape[0]

    # Pack P consecutive tokens per row so channel-last blocks are 128 lanes
    # wide (lane-dense loads/stores and 256-wide matmuls).
    P = 128 // C if 128 % C == 0 else 1
    T = N * H * W
    assert T % P == 0 and (T // P) % 8 == 0, "token count must be a multiple of 8*P"
    R = T // P
    PC = P * C

    fused = fuse_cgb_params(params, P)
    weight_args = [fused[k] for k in _FUSED_ORDER]

    x_pack = x_nhwc.reshape(R, P * Cx)      # free (contiguous) reshape
    y_pack = y_nhwc.reshape(R, P * Cy)

    tile_rows = _pick_tile_rows(R)
    grid = (R // tile_rows,)

    def wspec(a):
        # Whole weight resident in VMEM (constant index map). Double-buffering
        # of these ~0.6 MiB of weights is negligible, so no pl.Buffered tweak.
        return pl.BlockSpec(a.shape, lambda i: (0, 0))

    in_specs = ([pl.BlockSpec((tile_rows, P * Cx), lambda i: (i, 0)),
                 pl.BlockSpec((tile_rows, P * Cy), lambda i: (i, 0))]
                + [wspec(a) for a in weight_args])
    out_specs = [pl.BlockSpec((tile_rows, PC), lambda i: (i, 0)),
                 pl.BlockSpec((tile_rows, PC), lambda i: (i, 0))]
    out_shape = [jax.ShapeDtypeStruct((R, PC), x_nhwc.dtype),
                 jax.ShapeDtypeStruct((R, PC), x_nhwc.dtype)]

    ox, oy = pl.pallas_call(
        functools.partial(cgb_kernel, pc=PC),
        grid_spec=pltpu.PrefetchScalarGridSpec(
            num_scalar_prefetch=0,
            grid=grid,
            in_specs=in_specs,
            out_specs=out_specs),
        out_shape=out_shape,
        compiler_params=pltpu.CompilerParams(
            dimension_semantics=("parallel",)),
    )(x_pack, y_pack, *weight_args)

    ox = ox.reshape(N, H, W, C)             # free reshapes back to NHWC
    oy = oy.reshape(N, H, W, C)
    return ox, oy


def cgb_forward_nchw(x_nchw, y_nchw, params):
    """PyTorch-layout (NCHW) wrapper for API parity with the nn.Module.
    Prefer `cgb_forward` (NHWC) in JAX pipelines to skip the transposes."""
    x = jnp.transpose(x_nchw, (0, 2, 3, 1))
    y = jnp.transpose(y_nchw, (0, 2, 3, 1))
    ox, oy = cgb_forward(x, y, params)
    return (jnp.transpose(ox, (0, 3, 1, 2)),
            jnp.transpose(oy, (0, 3, 1, 2)))


if __name__ == "__main__":
    first_num_channels = 16   # channels of y
    num_channels = 32         # channels of x / output features
    drop_path = 0.0           # identity at inference
    grid_size = (2, 2)        # TODO(synk): unused — CGB_'s grid/block spatial
                              # gMLP (GetSpatialGatingWeights) source is
                              # unavailable; reduced to a channel-wise dense gate.

    key = jax.random.PRNGKey(0)
    kx, ky, kp = jax.random.split(key, 3)
    x = jax.random.normal(kx, (2, num_channels, 16, 16), jnp.float32)
    y = jax.random.normal(ky, (2, first_num_channels, 16, 16), jnp.float32)
    params = make_cgb_params(first_num_channels, num_channels, kp)

    out_x, out_y = cgb_forward_nchw(x, y, params)
    jax.block_until_ready((out_x, out_y))
    assert out_x.shape == (2, num_channels, 16, 16)
    assert out_y.shape == (2, num_channels, 16, 16)
    print("KERNEL_OK")
</pallas_src>

<mosaic_0001>
module attributes {stable_mosaic.version = 11 : i64} {
  func.func @cgb_kernel(%arg0: i32, %arg1: memref<64x128xf32, #tpu.memory_space<vmem>>, %arg2: memref<64x64xf32, #tpu.memory_space<vmem>>, %arg3: memref<128x256xbf16, #tpu.memory_space<vmem>>, %arg4: memref<64x256xbf16, #tpu.memory_space<vmem>>, %arg5: memref<256x256xbf16, #tpu.memory_space<vmem>>, %arg6: memref<1x256xf32, #tpu.memory_space<vmem>>, %arg7: memref<1x256xf32, #tpu.memory_space<vmem>>, %arg8: memref<256x256xbf16, #tpu.memory_space<vmem>>, %arg9: memref<1x256xf32, #tpu.memory_space<vmem>>, %arg10: memref<256x256xbf16, #tpu.memory_space<vmem>>, %arg11: memref<1x256xf32, #tpu.memory_space<vmem>>, %arg12: memref<256x256xbf16, #tpu.memory_space<vmem>>, %arg13: memref<1x256xf32, #tpu.memory_space<vmem>>, %arg14: memref<64x128xf32, #tpu.memory_space<vmem>>, %arg15: memref<64x128xf32, #tpu.memory_space<vmem>>) attributes {dimension_semantics = [#tpu.dimension_semantics<parallel>], iteration_bounds = array<i64: 2>, scalar_prefetch = 0 : i64, scratch_operands = 0 : i64, tpu.core_type = #tpu.core_type<tc>, window_params = [{transform_indices = @transform_0, window_bounds = array<i64: 64, 128>}, {transform_indices = @transform_1, window_bounds = array<i64: 64, 64>}, {pipeline_mode = #tpu.pipeline_mode<synchronous>, transform_indices = @transform_2, window_bounds = array<i64: 128, 256>}, {pipeline_mode = #tpu.pipeline_mode<synchronous>, transform_indices = @transform_3, window_bounds = array<i64: 64, 256>}, {pipeline_mode = #tpu.pipeline_mode<synchronous>, transform_indices = @transform_4, window_bounds = array<i64: 256, 256>}, {pipeline_mode = #tpu.pipeline_mode<synchronous>, transform_indices = @transform_5, window_bounds = array<i64: 1, 256>}, {pipeline_mode = #tpu.pipeline_mode<synchronous>, transform_indices = @transform_6, window_bounds = array<i64: 1, 256>}, {pipeline_mode = #tpu.pipeline_mode<synchronous>, transform_indices = @transform_7, window_bounds = array<i64: 256, 256>}, {pipeline_mode = #tpu.pipeline_mode<synchronous>, transform_indices = @transform_8, window_bounds = array<i64: 1, 256>}, {pipeline_mode = #tpu.pipeline_mode<synchronous>, transform_indices = @transform_9, window_bounds = array<i64: 256, 256>}, {pipeline_mode = #tpu.pipeline_mode<synchronous>, transform_indices = @transform_10, window_bounds = array<i64: 1, 256>}, {pipeline_mode = #tpu.pipeline_mode<synchronous>, transform_indices = @transform_11, window_bounds = array<i64: 256, 256>}, {pipeline_mode = #tpu.pipeline_mode<synchronous>, transform_indices = @transform_12, window_bounds = array<i64: 1, 256>}, {transform_indices = @transform_13, window_bounds = array<i64: 64, 128>}, {transform_indices = @transform_14, window_bounds = array<i64: 64, 128>}]} {
    %c0 = arith.constant 0 : index
    %c0_0 = arith.constant 0 : index
    %0 = vector.load %arg1[%c0, %c0_0] : memref<64x128xf32, #tpu.memory_space<vmem>>, vector<64x128xf32>
    %1 = arith.truncf %0 : vector<64x128xf32> to vector<64x128xbf16>
    %c0_1 = arith.constant 0 : index
    %c0_2 = arith.constant 0 : index
    %2 = vector.load %arg3[%c0_1, %c0_2] : memref<128x256xbf16, #tpu.memory_space<vmem>>, vector<128x256xbf16>
    %cst = arith.constant dense<0.000000e+00> : vector<64x256xf32>
    %3 = tpu.matmul %1, %2, %cst {dimension_numbers = #tpu.dot_dimension_numbers<[1], [0], [0], [1], [0, 0, 1, 1], [], []>} : vector<64x128xbf16>, vector<128x256xbf16>, vector<64x256xf32> -> vector<64x256xf32>
    %c0_3 = arith.constant 0 : index
    %c0_4 = arith.constant 0 : index
    %4 = vector.load %arg2[%c0_3, %c0_4] : memref<64x64xf32, #tpu.memory_space<vmem>>, vector<64x64xf32>
    %5 = arith.truncf %4 : vector<64x64xf32> to vector<64x64xbf16>
    %c0_5 = arith.constant 0 : index
    %c0_6 = arith.constant 0 : index
    %6 = vector.load %arg4[%c0_5, %c0_6] : memref<64x256xbf16, #tpu.memory_space<vmem>>, vector<64x256xbf16>
    %cst_7 = arith.constant dense<0.000000e+00> : vector<64x256xf32>
    %7 = tpu.matmul %5, %6, %cst_7 {dimension_numbers = #tpu.dot_dimension_numbers<[1], [0], [0], [1], [0, 0, 1, 1], [], []>} : vector<64x64xbf16>, vector<64x256xbf16>, vector<64x256xf32> -> vector<64x256xf32>
    %8 = arith.addf %3, %7 : vector<64x256xf32>
    %9 = arith.truncf %8 : vector<64x256xf32> to vector<64x256xbf16>
    %c0_8 = arith.constant 0 : index
    %c0_9 = arith.constant 0 : index
    %10 = vector.load %arg5[%c0_8, %c0_9] : memref<256x256xbf16, #tpu.memory_space<vmem>>, vector<256x256xbf16>
    %cst_10 = arith.constant dense<0.000000e+00> : vector<64x256xf32>
    %11 = tpu.matmul %9, %10, %cst_10 {dimension_numbers = #tpu.dot_dimension_numbers<[1], [0], [0], [1], [0, 0, 1, 1], [], []>} : vector<64x256xbf16>, vector<256x256xbf16>, vector<64x256xf32> -> vector<64x256xf32>
    %12 = arith.subf %8, %11 : vector<64x256xf32>
    %13 = arith.mulf %12, %12 : vector<64x256xf32>
    %14 = arith.truncf %13 : vector<64x256xf32> to vector<64x256xbf16>
    %c0_11 = arith.constant 0 : index
    %c0_12 = arith.constant 0 : index
    %15 = vector.load %arg5[%c0_11, %c0_12] : memref<256x256xbf16, #tpu.memory_space<vmem>>, vector<256x256xbf16>
    %cst_13 = arith.constant dense<0.000000e+00> : vector<64x256xf32>
    %16 = tpu.matmul %14, %15, %cst_13 {dimension_numbers = #tpu.dot_dimension_numbers<[1], [0], [0], [1], [0, 0, 1, 1], [], []>} : vector<64x256xbf16>, vector<256x256xbf16>, vector<64x256xf32> -> vector<64x256xf32>
    %cst_14 = arith.constant 9.99999974E-6 : f32
    %17 = vector.broadcast %cst_14 : f32 to vector<64x256xf32>
    %18 = arith.addf %16, %17 : vector<64x256xf32>
    %19 = math.rsqrt %18 : vector<64x256xf32>
    %20 = arith.mulf %12, %19 : vector<64x256xf32>
    %c0_15 = arith.constant 0 : index
    %c0_16 = arith.constant 0 : index
    %21 = vector.load %arg6[%c0_15, %c0_16] : memref<1x256xf32, #tpu.memory_space<vmem>>, vector<1x256xf32>
    %22 = vector.broadcast %21 : vector<1x256xf32> to vector<64x256xf32>
    %23 = arith.mulf %20, %22 : vector<64x256xf32>
    %c0_17 = arith.constant 0 : index
    %c0_18 = arith.constant 0 : index
    %24 = vector.load %arg7[%c0_17, %c0_18] : memref<1x256xf32, #tpu.memory_space<vmem>>, vector<1x256xf32>
    %25 = vector.broadcast %24 : vector<1x256xf32> to vector<64x256xf32>
    %26 = arith.addf %23, %25 : vector<64x256xf32>
    %27 = arith.truncf %26 : vector<64x256xf32> to vector<64x256xbf16>
    %c0_19 = arith.constant 0 : index
    %c0_20 = arith.constant 0 : index
    %28 = vector.load %arg8[%c0_19, %c0_20] : memref<256x256xbf16, #tpu.memory_space<vmem>>, vector<256x256xbf16>
    %cst_21 = arith.constant dense<0.000000e+00> : vector<64x256xf32>
    %29 = tpu.matmul %27, %28, %cst_21 {dimension_numbers = #tpu.dot_dimension_numbers<[1], [0], [0], [1], [0, 0, 1, 1], [], []>} : vector<64x256xbf16>, vector<256x256xbf16>, vector<64x256xf32> -> vector<64x256xf32>
    %c0_22 = arith.constant 0 : index
    %c0_23 = arith.constant 0 : index
    %30 = vector.load %arg9[%c0_22, %c0_23] : memref<1x256xf32, #tpu.memory_space<vmem>>, vector<1x256xf32>
    %31 = vector.broadcast %30 : vector<1x256xf32> to vector<64x256xf32>
    %32 = arith.addf %29, %31 : vector<64x256xf32>
    %33 = arith.mulf %32, %32 : vector<64x256xf32>
    %34 = arith.mulf %32, %33 : vector<64x256xf32>
    %cst_24 = arith.constant 4.471500e-02 : f32
    %35 = vector.broadcast %cst_24 : f32 to vector<64x256xf32>
    %36 = arith.mulf %35, %34 : vector<64x256xf32>
    %37 = arith.addf %32, %36 : vector<64x256xf32>
    %cst_25 = arith.constant 0.797884583 : f32
    %38 = vector.broadcast %cst_25 : f32 to vector<64x256xf32>
    %39 = arith.mulf %38, %37 : vector<64x256xf32>
    %40 = math.tanh %39 : vector<64x256xf32>
    %cst_26 = arith.constant 1.000000e+00 : f32
    %41 = vector.broadcast %cst_26 : f32 to vector<64x256xf32>
    %42 = arith.addf %41, %40 : vector<64x256xf32>
    %cst_27 = arith.constant 5.000000e-01 : f32
    %43 = vector.broadcast %cst_27 : f32 to vector<64x256xf32>
    %44 = arith.mulf %43, %42 : vector<64x256xf32>
    %45 = arith.mulf %32, %44 : vector<64x256xf32>
    %46 = arith.truncf %45 : vector<64x256xf32> to vector<64x256xbf16>
    %c0_28 = arith.constant 0 : index
    %c0_29 = arith.constant 0 : index
    %47 = vector.load %arg10[%c0_28, %c0_29] : memref<256x256xbf16, #tpu.memory_space<vmem>>, vector<256x256xbf16>
    %cst_30 = arith.constant dense<0.000000e+00> : vector<64x256xf32>
    %48 = tpu.matmul %46, %47, %cst_30 {dimension_numbers = #tpu.dot_dimension_numbers<[1], [0], [0], [1], [0, 0, 1, 1], [], []>} : vector<64x256xbf16>, vector<256x256xbf16>, vector<64x256xf32> -> vector<64x256xf32>
    %c0_31 = arith.constant 0 : index
    %c0_32 = arith.constant 0 : index
    %49 = vector.load %arg11[%c0_31, %c0_32] : memref<1x256xf32, #tpu.memory_space<vmem>>, vector<1x256xf32>
    %50 = vector.broadcast %49 : vector<1x256xf32> to vector<64x256xf32>
    %51 = arith.addf %48, %50 : vector<64x256xf32>
    %52 = arith.mulf %45, %51 : vector<64x256xf32>
    %53 = arith.truncf %52 : vector<64x256xf32> to vector<64x256xbf16>
    %c0_33 = arith.constant 0 : index
    %c0_34 = arith.constant 0 : index
    %54 = vector.load %arg12[%c0_33, %c0_34] : memref<256x256xbf16, #tpu.memory_space<vmem>>, vector<256x256xbf16>
    %cst_35 = arith.constant dense<0.000000e+00> : vector<64x256xf32>
    %55 = tpu.matmul %53, %54, %cst_35 {dimension_numbers = #tpu.dot_dimension_numbers<[1], [0], [0], [1], [0, 0, 1, 1], [], []>} : vector<64x256xbf16>, vector<256x256xbf16>, vector<64x256xf32> -> vector<64x256xf32>
    %c0_36 = arith.constant 0 : index
    %c0_37 = arith.constant 0 : index
    %56 = vector.load %arg13[%c0_36, %c0_37] : memref<1x256xf32, #tpu.memory_space<vmem>>, vector<1x256xf32>
    %57 = vector.broadcast %56 : vector<1x256xf32> to vector<64x256xf32>
    %58 = arith.addf %55, %57 : vector<64x256xf32>
    %59 = arith.addf %58, %8 : vector<64x256xf32>
    %60 = vector.extract_strided_slice %59 {offsets = [0, 128], sizes = [64, 128], strides = [1, 1]} : vector<64x256xf32> to vector<64x128xf32>
    %61 = vector.extract_strided_slice %59 {offsets = [0, 0], sizes = [64, 128], strides = [1, 1]} : vector<64x256xf32> to vector<64x128xf32>
    %62 = arith.addf %61, %60 : vector<64x128xf32>
    %c0_38 = arith.constant 0 : index
    %c0_39 = arith.constant 0 : index
    %63 = vector.load %arg14[%c0_38, %c0_39] : memref<64x128xf32, #tpu.memory_space<vmem>>, vector<64x128xf32>
    tpu.vector_store %arg14[%c0_38, %c0_39], %62 {strides = array<i32>} : memref<64x128xf32, #tpu.memory_space<vmem>>, vector<64x128xf32>,
    %c0_40 = arith.constant 0 : index
    %c0_41 = arith.constant 0 : index
    %64 = vector.load %arg15[%c0_40, %c0_41] : memref<64x128xf32, #tpu.memory_space<vmem>>, vector<64x128xf32>
    tpu.vector_store %arg15[%c0_40, %c0_41], %60 {strides = array<i32>} : memref<64x128xf32, #tpu.memory_space<vmem>>, vector<64x128xf32>,
    return
  }
  func.func @transform_0(%arg0: i32) -> (i32, i32) {
    %c0_i32 = arith.constant 0 : i32
    %c0_i32_0 = arith.constant 0 : i32
    return %arg0, %c0_i32 : i32, i32
  }
  func.func @transform_1(%arg0: i32) -> (i32, i32) {
    %c0_i32 = arith.constant 0 : i32
    %c0_i32_0 = arith.constant 0 : i32
    return %arg0, %c0_i32 : i32, i32
  }
  func.func @transform_2(%arg0: i32) -> (i32, i32) {
    %c0_i32 = arith.constant 0 : i32
    %c0_i32_0 = arith.constant 0 : i32
    %c0_i32_1 = arith.constant 0 : i32
    return %c0_i32, %c0_i32_0 : i32, i32
  }
  func.func @transform_3(%arg0: i32) -> (i32, i32) {
    %c0_i32 = arith.constant 0 : i32
    %c0_i32_0 = arith.constant 0 : i32
    %c0_i32_1 = arith.constant 0 : i32
    return %c0_i32, %c0_i32_0 : i32, i32
  }
  func.func @transform_4(%arg0: i32) -> (i32, i32) {
    %c0_i32 = arith.constant 0 : i32
    %c0_i32_0 = arith.constant 0 : i32
    %c0_i32_1 = arith.constant 0 : i32
    return %c0_i32, %c0_i32_0 : i32, i32
  }
  func.func @transform_5(%arg0: i32) -> (i32, i32) {
    %c0_i32 = arith.constant 0 : i32
    %c0_i32_0 = arith.constant 0 : i32
    %c0_i32_1 = arith.constant 0 : i32
    return %c0_i32, %c0_i32_0 : i32, i32
  }
  func.func @transform_6(%arg0: i32) -> (i32, i32) {
    %c0_i32 = arith.constant 0 : i32
    %c0_i32_0 = arith.constant 0 : i32
    %c0_i32_1 = arith.constant 0 : i32
    return %c0_i32, %c0_i32_0 : i32, i32
  }
  func.func @transform_7(%arg0: i32) -> (i32, i32) {
    %c0_i32 = arith.constant 0 : i32
    %c0_i32_0 = arith.constant 0 : i32
    %c0_i32_1 = arith.constant 0 : i32
    return %c0_i32, %c0_i32_0 : i32, i32
  }
  func.func @transform_8(%arg0: i32) -> (i32, i32) {
    %c0_i32 = arith.constant 0 : i32
    %c0_i32_0 = arith.constant 0 : i32
    %c0_i32_1 = arith.constant 0 : i32
    return %c0_i32, %c0_i32_0 : i32, i32
  }
  func.func @transform_9(%arg0: i32) -> (i32, i32) {
    %c0_i32 = arith.constant 0 : i32
    %c0_i32_0 = arith.constant 0 : i32
    %c0_i32_1 = arith.constant 0 : i32
    return %c0_i32, %c0_i32_0 : i32, i32
  }
  func.func @transform_10(%arg0: i32) -> (i32, i32) {
    %c0_i32 = arith.constant 0 : i32
    %c0_i32_0 = arith.constant 0 : i32
    %c0_i32_1 = arith.constant 0 : i32
    return %c0_i32, %c0_i32_0 : i32, i32
  }
  func.func @transform_11(%arg0: i32) -> (i32, i32) {
    %c0_i32 = arith.constant 0 : i32
    %c0_i32_0 = arith.constant 0 : i32
    %c0_i32_1 = arith.constant 0 : i32
    return %c0_i32, %c0_i32_0 : i32, i32
  }
  func.func @transform_12(%arg0: i32) -> (i32, i32) {
    %c0_i32 = arith.constant 0 : i32
    %c0_i32_0 = arith.constant 0 : i32
    %c0_i32_1 = arith.constant 0 : i32
    return %c0_i32, %c0_i32_0 : i32, i32
  }
  func.func @transform_13(%arg0: i32) -> (i32, i32) {
    %c0_i32 = arith.constant 0 : i32
    %c0_i32_0 = arith.constant 0 : i32
    return %arg0, %c0_i32 : i32, i32
  }
  func.func @transform_14(%arg0: i32) -> (i32, i32) {
    %c0_i32 = arith.constant 0 : i32
    %c0_i32_0 = arith.constant 0 : i32
    return %arg0, %c0_i32 : i32, i32
  }
}

</mosaic_0001>

<llo_original>
// kernel: tpu_custom_call.1
$region0: #{tpu_custom_call.1}
  #allocation0 [shape = 'u32[]', space=smem, size = 0x4, offset = 0x4, fixed_abs, tag = 'smem constant byte address 0x4 - core index']
  #allocation1 [shape = 'u32[144,128]{1,0:T(1,128)}', space=vmem, size = 0x12000, scoped, tag = 'internal scratch']
  %s0 = inlined_call_operand.vmem [shape: f32[128,128], index: 0, kind: input, shape index: {}]
  %s1 = inlined_call_operand.vmem [shape: f32[128,64], index: 1, kind: input, shape index: {}]
  %s2 = inlined_call_operand.hbm [shape: bf16[128,256], index: 2, kind: input, shape index: {}]
  %s3 = inlined_call_operand.vmem [shape: bf16[64,256], index: 3, kind: input, shape index: {}]
  %s4 = inlined_call_operand.hbm [shape: bf16[256,256], index: 4, kind: input, shape index: {}]
  %s5 = inlined_call_operand.vmem [shape: f32[1,256], index: 5, kind: input, shape index: {}]
  %s6 = inlined_call_operand.vmem [shape: f32[1,256], index: 6, kind: input, shape index: {}]
  %s7 = inlined_call_operand.hbm [shape: bf16[256,256], index: 7, kind: input, shape index: {}]
  %s8 = inlined_call_operand.vmem [shape: f32[1,256], index: 8, kind: input, shape index: {}]
  %s9 = inlined_call_operand.hbm [shape: bf16[256,256], index: 9, kind: input, shape index: {}]
  %s10 = inlined_call_operand.vmem [shape: f32[1,256], index: 10, kind: input, shape index: {}]
  %s11 = inlined_call_operand.hbm [shape: bf16[256,256], index: 11, kind: input, shape index: {}]
  %s12 = inlined_call_operand.vmem [shape: f32[1,256], index: 12, kind: input, shape index: {}]
  %s13 = inlined_call_operand.hbm [shape: f32[128,128], index: 13, kind: output, shape index: {0}]
  %s14 = inlined_call_operand.hbm [shape: f32[128,128], index: 14, kind: output, shape index: {1}]
  %15 = xla_tuple %s13, %s14
  %s16 = sld [smem:[#allocation0]]
  $region113: #{tpu_custom_call.1} parent=0
    _
  %s18 = ssub.s32 1, %s16
  %s19 = scalar_select 0, %s18, %s16
  $region1: #{tpu_custom_call.1} parent=0
    #allocation2 [shape = 'u8[65536]{0}', space=vmem, size = 0x10000, scoped, tag = 'input window, operand 2, single buffered']
    #allocation3 [shape = 's32[2]{0}', space=sflag, size = 0x8, scoped, tag = 'scoped memory for tpu_custom_call.1']
    #allocation4 [shape = 's32[2]{0}', space=sflag, size = 0x8, scoped, tag = 'scoped memory for tpu_custom_call.1']
    #allocation5 [shape = 'u8[131072]{0}', space=vmem, size = 0x20000, scoped, tag = 'input window, operand 4, single buffered']
    #allocation6 [shape = 's32[1]{0}', space=sflag, size = 0x4, scoped, tag = 'scoped memory for tpu_custom_call.1']
    #allocation7 [shape = 'u8[131072]{0}', space=vmem, size = 0x20000, scoped, tag = 'input window, operand 7, single buffered']
    #allocation8 [shape = 'u8[131072]{0}', space=vmem, size = 0x20000, scoped, tag = 'input window, operand 9, single buffered']
    #allocation9 [shape = 's32[1]{0}', space=sflag, size = 0x4, scoped, tag = 'scoped memory for tpu_custom_call.1']
    #allocation10 [shape = 'u8[131072]{0}', space=vmem, size = 0x20000, scoped, tag = 'input window, operand 11, single buffered']
    #allocation11 [shape = 'u8[65536]{0}', space=vmem, size = 0x10000, scoped, tag = 'output window, operand 0']
    #allocation12 [shape = 'u8[65536]{0}', space=vmem, size = 0x10000, scoped, tag = 'output window, operand 1']
    #allocation13 [shape = 's32[2]{0}', space=sflag, size = 0x8, scoped, tag = 'scoped memory for tpu_custom_call.1']
    %20 = vsyncpa [#allocation3], 0
    %21 = vsyncpa [#allocation6], 0
    %22 = vsyncpa [#allocation9], 0
    %23 = vsyncpa [#allocation4], 0
    %s24 = scalar_lea.sflag [#allocation4], 1
    %25 = vsyncpa %s24, 0
    %26 = vsyncpa [#allocation13], 0
    %s27 = scalar_lea.sflag [#allocation13], 1
    %28 = vsyncpa %s27, 0
    loop: start=0, step=1, limit=4
    $region2: #{tpu_custom_call.1} parent=1 // loop_pre_header
      _
    $region3: #{tpu_custom_call.1} parent=1 // loop_header
      %s30 = sphi 0, %s34
      %p31 = scmp.ge.s32.totalorder %s30, 4
      %s40 = sphi 0, %s42
      %s43 = sphi 0, %s40
      %s44 = sphi 0, %s43
      %s60 = sphi 0, %s44
      %s66 = sphi 0, %s68
      %s69 = sphi 0, %s66
      %s70 = sphi 0, %s69
      %s86 = sphi 0, %s70
      %s90 = sphi 0, %s90
      %s92 = sphi 0, %s90
      %s93 = sphi 0, %s92
      %s107 = sphi 0, %s93
      %s111 = sphi 0, %s111
      %s113 = sphi 0, %s111
      %s114 = sphi 0, %s113
      %s128 = sphi 0, %s114
      %s132 = sphi 0, %s132
      %s134 = sphi 0, %s132
      %s135 = sphi 0, %s134
      %s149 = sphi 0, %s135
      %s153 = sphi 0, %s153
      %s155 = sphi 0, %s153
      %s156 = sphi 0, %s155
      %s170 = sphi 0, %s156
      %s174 = sphi 0, %s174
      %s176 = sphi 0, %s174
      %s177 = sphi 0, %s176
      %s191 = sphi 0, %s177
      %s195 = sphi 0, %s195
      %s197 = sphi 0, %s195
      %s198 = sphi 0, %s197
      %s212 = sphi 0, %s198
      %s216 = sphi 0, %s216
      %s218 = sphi 0, %s216
      %s219 = sphi 0, %s218
      %s233 = sphi 0, %s219
      %s237 = sphi 0, %s237
      %s239 = sphi 0, %s237
      %s240 = sphi 0, %s239
      %s254 = sphi 0, %s240
      %s258 = sphi 0, %s258
      %s260 = sphi 0, %s258
      %s261 = sphi 0, %s260
      %s275 = sphi 0, %s261
      %s279 = sphi 0, %s279
      %s281 = sphi 0, %s279
      %s282 = sphi 0, %s281
      %s296 = sphi 0, %s282
      %s300 = sphi 0, %s300
      %s302 = sphi 0, %s300
      %s303 = sphi 0, %s302
      %s317 = sphi 0, %s303
      %s323 = sphi 0, %s325
      %s326 = sphi 0, %s323
      %s327 = sphi 0, %s326
      %s343 = sphi 0, %s327
      %s349 = sphi 0, %s351
      %s352 = sphi 0, %s349
      %s353 = sphi 0, %s352
      %s369 = sphi 0, %s353
    $region4: #{tpu_custom_call.1} parent=1 // loop_header_branch
      %33 = sbr.rel (%p31) target = $region8
    $region5: #{tpu_custom_call.1} parent=1 // loop_body
      %s35 = ssub.s32 %s30, 1
      %s36 = ssub.s32 %s30, 2
      %s37 = sadd.s32 %s30, 1
      %s38 = ssub.s32 %s30, %s37
      %p39 = scmp.eq.s32.totalorder %s38, 0
      %s41 = sadd.s32 %s40, 1
      %s42 = scalar_select %p39, %s40, %s41
      %p45 = pneg %p39
      %p46 = scmp.eq.s32.totalorder %s30, 1
      %p47 = por %p45, %p46
      %p48 = scmp.ne.s32.totalorder %s40, %s43
      %p49 = scmp.eq.s32.totalorder %s30, 0
      %p50 = por %p48, %p49
      %p51 = scmp.ne.s32.totalorder %s40, %s43
      %p52 = scmp.eq.s32.totalorder %s35, 1
      %p53 = por %p51, %p52
      %p54 = scmp.ne.s32.totalorder %s43, %s44
      %p55 = scmp.eq.s32.totalorder %s35, 0
      %p56 = por %p54, %p55
      %p57 = scmp.ne.s32.totalorder %s43, %s44
      %p58 = scmp.eq.s32.totalorder %s36, 1
      %p59 = por %p57, %p58
      %p61 = scmp.ne.s32.totalorder %s44, %s60
      %p62 = scmp.eq.s32.totalorder %s36, 0
      %p63 = por %p61, %p62
      %s64 = ssub.s32 %s30, %s37
      %p65 = scmp.eq.s32.totalorder %s64, 0
      %s67 = sadd.s32 %s66, 1
      %s68 = scalar_select %p65, %s66, %s67
      %p71 = pneg %p65
      %p72 = scmp.eq.s32.totalorder %s30, 1
      %p73 = por %p71, %p72
      %p74 = scmp.ne.s32.totalorder %s66, %s69
      %p75 = scmp.eq.s32.totalorder %s30, 0
      %p76 = por %p74, %p75
      %p77 = scmp.ne.s32.totalorder %s66, %s69
      %p78 = scmp.eq.s32.totalorder %s35, 1
      %p79 = por %p77, %p78
      %p80 = scmp.ne.s32.totalorder %s69, %s70
      %p81 = scmp.eq.s32.totalorder %s35, 0
      %p82 = por %p80, %p81
      %p83 = scmp.ne.s32.totalorder %s69, %s70
      %p84 = scmp.eq.s32.totalorder %s36, 1
      %p85 = por %p83, %p84
      %p87 = scmp.ne.s32.totalorder %s70, %s86
      %p88 = scmp.eq.s32.totalorder %s36, 0
      %p89 = por %p87, %p88
      %s91 = sadd.s32 %s90, 1
      %p94 = scmp.eq.s32.totalorder %s30, 1
      %p95 = scmp.ne.s32.totalorder %s90, %s92
      %p96 = scmp.eq.s32.totalorder %s30, 0
      %p97 = por %p95, %p96
      %p98 = scmp.ne.s32.totalorder %s90, %s92
      %p99 = scmp.eq.s32.totalorder %s35, 1
      %p100 = por %p98, %p99
      %p101 = scmp.ne.s32.totalorder %s92, %s93
      %p102 = scmp.eq.s32.totalorder %s35, 0
      %p103 = por %p101, %p102
      %p104 = scmp.ne.s32.totalorder %s92, %s93
      %p105 = scmp.eq.s32.totalorder %s36, 1
      %p106 = por %p104, %p105
      %p108 = scmp.ne.s32.totalorder %s93, %s107
      %p109 = scmp.eq.s32.totalorder %s36, 0
      %p110 = por %p108, %p109
      %s112 = sadd.s32 %s111, 1
      %p115 = scmp.eq.s32.totalorder %s30, 1
      %p116 = scmp.ne.s32.totalorder %s111, %s113
      %p117 = scmp.eq.s32.totalorder %s30, 0
      %p118 = por %p116, %p117
      %p119 = scmp.ne.s32.totalorder %s111, %s113
      %p120 = scmp.eq.s32.totalorder %s35, 1
      %p121 = por %p119, %p120
      %p122 = scmp.ne.s32.totalorder %s113, %s114
      %p123 = scmp.eq.s32.totalorder %s35, 0
      %p124 = por %p122, %p123
      %p125 = scmp.ne.s32.totalorder %s113, %s114
      %p126 = scmp.eq.s32.totalorder %s36, 1
      %p127 = por %p125, %p126
      %p129 = scmp.ne.s32.totalorder %s114, %s128
      %p130 = scmp.eq.s32.totalorder %s36, 0
      %p131 = por %p129, %p130
      %s133 = sadd.s32 %s132, 1
      %p136 = scmp.eq.s32.totalorder %s30, 1
      %p137 = scmp.ne.s32.totalorder %s132, %s134
      %p138 = scmp.eq.s32.totalorder %s30, 0
      %p139 = por %p137, %p138
      %p140 = scmp.ne.s32.totalorder %s132, %s134
      %p141 = scmp.eq.s32.totalorder %s35, 1
      %p142 = por %p140, %p141
      %p143 = scmp.ne.s32.totalorder %s134, %s135
      %p144 = scmp.eq.s32.totalorder %s35, 0
      %p145 = por %p143, %p144
      %p146 = scmp.ne.s32.totalorder %s134, %s135
      %p147 = scmp.eq.s32.totalorder %s36, 1
      %p148 = por %p146, %p147
      %p150 = scmp.ne.s32.totalorder %s135, %s149
      %p151 = scmp.eq.s32.totalorder %s36, 0
      %p152 = por %p150, %p151
      %s154 = sadd.s32 %s153, 1
      %p157 = scmp.eq.s32.totalorder %s30, 1
      %p158 = scmp.ne.s32.totalorder %s153, %s155
      %p159 = scmp.eq.s32.totalorder %s30, 0
      %p160 = por %p158, %p159
      %p161 = scmp.ne.s32.totalorder %s153, %s155
      %p162 = scmp.eq.s32.totalorder %s35, 1
      %p163 = por %p161, %p162
      %p164 = scmp.ne.s32.totalorder %s155, %s156
      %p165 = scmp.eq.s32.totalorder %s35, 0
      %p166 = por %p164, %p165
      %p167 = scmp.ne.s32.totalorder %s155, %s156
      %p168 = scmp.eq.s32.totalorder %s36, 1
      %p169 = por %p167, %p168
      %p171 = scmp.ne.s32.totalorder %s156, %s170
      %p172 = scmp.eq.s32.totalorder %s36, 0
      %p173 = por %p171, %p172
      %s175 = sadd.s32 %s174, 1
      %p178 = scmp.eq.s32.totalorder %s30, 1
      %p179 = scmp.ne.s32.totalorder %s174, %s176
      %p180 = scmp.eq.s32.totalorder %s30, 0
      %p181 = por %p179, %p180
      %p182 = scmp.ne.s32.totalorder %s174, %s176
      %p183 = scmp.eq.s32.totalorder %s35, 1
      %p184 = por %p182, %p183
      %p185 = scmp.ne.s32.totalorder %s176, %s177
      %p186 = scmp.eq.s32.totalorder %s35, 0
      %p187 = por %p185, %p186
      %p188 = scmp.ne.s32.totalorder %s176, %s177
      %p189 = scmp.eq.s32.totalorder %s36, 1
      %p190 = por %p188, %p189
      %p192 = scmp.ne.s32.totalorder %s177, %s191
      %p193 = scmp.eq.s32.totalorder %s36, 0
      %p194 = por %p192, %p193
      %s196 = sadd.s32 %s195, 1
      %p199 = scmp.eq.s32.totalorder %s30, 1
      %p200 = scmp.ne.s32.totalorder %s195, %s197
      %p201 = scmp.eq.s32.totalorder %s30, 0
      %p202 = por %p200, %p201
      %p203 = scmp.ne.s32.totalorder %s195, %s197
      %p204 = scmp.eq.s32.totalorder %s35, 1
      %p205 = por %p203, %p204
      %p206 = scmp.ne.s32.totalorder %s197, %s198
      %p207 = scmp.eq.s32.totalorder %s35, 0
      %p208 = por %p206, %p207
      %p209 = scmp.ne.s32.totalorder %s197, %s198
      %p210 = scmp.eq.s32.totalorder %s36, 1
      %p211 = por %p209, %p210
      %p213 = scmp.ne.s32.totalorder %s198, %s212
      %p214 = scmp.eq.s32.totalorder %s36, 0
      %p215 = por %p213, %p214
      %s217 = sadd.s32 %s216, 1
      %p220 = scmp.eq.s32.totalorder %s30, 1
      %p221 = scmp.ne.s32.totalorder %s216, %s218
      %p222 = scmp.eq.s32.totalorder %s30, 0
      %p223 = por %p221, %p222
      %p224 = scmp.ne.s32.totalorder %s216, %s218
      %p225 = scmp.eq.s32.totalorder %s35, 1
      %p226 = por %p224, %p225
      %p227 = scmp.ne.s32.totalorder %s218, %s219
      %p228 = scmp.eq.s32.totalorder %s35, 0
      %p229 = por %p227, %p228
      %p230 = scmp.ne.s32.totalorder %s218, %s219
      %p231 = scmp.eq.s32.totalorder %s36, 1
      %p232 = por %p230, %p231
      %p234 = scmp.ne.s32.totalorder %s219, %s233
      %p235 = scmp.eq.s32.totalorder %s36, 0
      %p236 = por %p234, %p235
      %s238 = sadd.s32 %s237, 1
      %p241 = scmp.eq.s32.totalorder %s30, 1
      %p242 = scmp.ne.s32.totalorder %s237, %s239
      %p243 = scmp.eq.s32.totalorder %s30, 0
      %p244 = por %p242, %p243
      %p245 = scmp.ne.s32.totalorder %s237, %s239
      %p246 = scmp.eq.s32.totalorder %s35, 1
      %p247 = por %p245, %p246
      %p248 = scmp.ne.s32.totalorder %s239, %s240
      %p249 = scmp.eq.s32.totalorder %s35, 0
      %p250 = por %p248, %p249
      %p251 = scmp.ne.s32.totalorder %s239, %s240
      %p252 = scmp.eq.s32.totalorder %s36, 1
      %p253 = por %p251, %p252
      %p255 = scmp.ne.s32.totalorder %s240, %s254
      %p256 = scmp.eq.s32.totalorder %s36, 0
      %p257 = por %p255, %p256
      %s259 = sadd.s32 %s258, 1
      %p262 = scmp.eq.s32.totalorder %s30, 1
      %p263 = scmp.ne.s32.totalorder %s258, %s260
      %p264 = scmp.eq.s32.totalorder %s30, 0
      %p265 = por %p263, %p264
      %p266 = scmp.ne.s32.totalorder %s258, %s260
      %p267 = scmp.eq.s32.totalorder %s35, 1
      %p268 = por %p266, %p267
      %p269 = scmp.ne.s32.totalorder %s260, %s261
      %p270 = scmp.eq.s32.totalorder %s35, 0
      %p271 = por %p269, %p270
      %p272 = scmp.ne.s32.totalorder %s260, %s261
      %p273 = scmp.eq.s32.totalorder %s36, 1
      %p274 = por %p272, %p273
      %p276 = scmp.ne.s32.totalorder %s261, %s275
      %p277 = scmp.eq.s32.totalorder %s36, 0
      %p278 = por %p276, %p277
      %s280 = sadd.s32 %s279, 1
      %p283 = scmp.eq.s32.totalorder %s30, 1
      %p284 = scmp.ne.s32.totalorder %s279, %s281
      %p285 = scmp.eq.s32.totalorder %s30, 0
      %p286 = por %p284, %p285
      %p287 = scmp.ne.s32.totalorder %s279, %s281
      %p288 = scmp.eq.s32.totalorder %s35, 1
      %p289 = por %p287, %p288
      %p290 = scmp.ne.s32.totalorder %s281, %s282
      %p291 = scmp.eq.s32.totalorder %s35, 0
      %p292 = por %p290, %p291
      %p293 = scmp.ne.s32.totalorder %s281, %s282
      %p294 = scmp.eq.s32.totalorder %s36, 1
      %p295 = por %p293, %p294
      %p297 = scmp.ne.s32.totalorder %s282, %s296
      %p298 = scmp.eq.s32.totalorder %s36, 0
      %p299 = por %p297, %p298
      %s301 = sadd.s32 %s300, 1
      %p304 = scmp.eq.s32.totalorder %s30, 1
      %p305 = scmp.ne.s32.totalorder %s300, %s302
      %p306 = scmp.eq.s32.totalorder %s30, 0
      %p307 = por %p305, %p306
      %p308 = scmp.ne.s32.totalorder %s300, %s302
      %p309 = scmp.eq.s32.totalorder %s35, 1
      %p310 = por %p308, %p309
      %p311 = scmp.ne.s32.totalorder %s302, %s303
      %p312 = scmp.eq.s32.totalorder %s35, 0
      %p313 = por %p311, %p312
      %p314 = scmp.ne.s32.totalorder %s302, %s303
      %p315 = scmp.eq.s32.totalorder %s36, 1
      %p316 = por %p314, %p315
      %p318 = scmp.ne.s32.totalorder %s303, %s317
      %p319 = scmp.eq.s32.totalorder %s36, 0
      %p320 = por %p318, %p319
      %s321 = ssub.s32 %s30, %s37
      %p322 = scmp.eq.s32.totalorder %s321, 0
      %s324 = sadd.s32 %s323, 1
      %s325 = scalar_select %p322, %s323, %s324
      %p328 = pneg %p322
      %p329 = scmp.eq.s32.totalorder %s30, 1
      %p330 = por %p328, %p329
      %p331 = scmp.ne.s32.totalorder %s323, %s326
      %p332 = scmp.eq.s32.totalorder %s30, 0
      %p333 = por %p331, %p332
      %p334 = scmp.ne.s32.totalorder %s323, %s326
      %p335 = scmp.eq.s32.totalorder %s35, 1
      %p336 = por %p334, %p335
      %p337 = scmp.ne.s32.totalorder %s326, %s327
      %p338 = scmp.eq.s32.totalorder %s35, 0
      %p339 = por %p337, %p338
      %p340 = scmp.ne.s32.totalorder %s326, %s327
      %p341 = scmp.eq.s32.totalorder %s36, 1
      %p342 = por %p340, %p341
      %p344 = scmp.ne.s32.totalorder %s327, %s343
      %p345 = scmp.eq.s32.totalorder %s36, 0
      %p346 = por %p344, %p345
      %s347 = ssub.s32 %s30, %s37
      %p348 = scmp.eq.s32.totalorder %s347, 0
      %s350 = sadd.s32 %s349, 1
      %s351 = scalar_select %p348, %s349, %s350
      %p354 = pneg %p348
      %p355 = scmp.eq.s32.totalorder %s30, 1
      %p356 = por %p354, %p355
      %p357 = scmp.ne.s32.totalorder %s349, %s352
      %p358 = scmp.eq.s32.totalorder %s30, 0
      %p359 = por %p357, %p358
      %p360 = scmp.ne.s32.totalorder %s349, %s352
      %p361 = scmp.eq.s32.totalorder %s35, 1
      %p362 = por %p360, %p361
      %p363 = scmp.ne.s32.totalorder %s352, %s353
      %p364 = scmp.eq.s32.totalorder %s35, 0
      %p365 = por %p363, %p364
      %p366 = scmp.ne.s32.totalorder %s352, %s353
      %p367 = scmp.eq.s32.totalorder %s36, 1
      %p368 = por %p366, %p367
      %p370 = scmp.ne.s32.totalorder %s353, %s369
      %p371 = scmp.eq.s32.totalorder %s36, 0
      %p372 = por %p370, %p371
      %p373 = scmp.le.s32.totalorder 1, %s30
      %p374 = scmp.lt.s32.totalorder %s30, 3
      %p375 = pnand %p373, %p374
      %p376 = pneg %p375
      // Predicated region
      $region9: #{tpu_custom_call.1} parent=5 // pred_check
        _
      $region10: #{tpu_custom_call.1} parent=5 // pred_check_branch
        %378 = sbr.rel (%p375) target = $region12
      $region11: #{tpu_custom_call.1} parent=5 // pred_region
        %s379 = ssub.s32 %s30, 1
        // Predicated region
        $region13: #{tpu_custom_call.1} parent=11 // pred_check
          %p380 = pneg %p103
        $region14: #{tpu_custom_call.1} parent=11 // pred_check_branch
          %382 = sbr.rel (%p380) target = $region16
        $region15: #{tpu_custom_call.1} parent=11 // pred_region
          %s384 = ssub.s32 2048, 2048
          %385 = vsyncadd [#allocation3], %s384
          %s386 = sshll.u32 [#allocation2], 4
          %s387 = int_to_ptr.vmem [resolvable:$true] %s386
          %392 = dma.hbm_to_vmem [thread:$0]  %s2, 2048, %s387, [#allocation3], 128, 128, 8
        $region16: #{tpu_custom_call.1} parent=11 // pred_fallthru
          _
        // Predicated region
        $region17: #{tpu_custom_call.1} parent=11 // pred_check
          %p393 = pneg %p124
        $region18: #{tpu_custom_call.1} parent=11 // pred_check_branch
          %395 = sbr.rel (%p393) target = $region20
        $region19: #{tpu_custom_call.1} parent=11 // pred_region
          _
        $region20: #{tpu_custom_call.1} parent=11 // pred_fallthru
          _
        // Predicated region
        $region21: #{tpu_custom_call.1} parent=11 // pred_check
          %p396 = pneg %p145
        $region22: #{tpu_custom_call.1} parent=11 // pred_check_branch
          %398 = sbr.rel (%p396) target = $region24
        $region23: #{tpu_custom_call.1} parent=11 // pred_region
          %s400 = ssub.s32 4096, 4096
          %401 = vsyncadd [#allocation6], %s400
          %s402 = sshll.u32 [#allocation5], 4
          %s403 = int_to_ptr.vmem [resolvable:$true] %s402
          %408 = dma.hbm_to_vmem [thread:$0]  %s4, 4096, %s403, [#allocation6], 128, 128, 8
        $region24: #{tpu_custom_call.1} parent=11 // pred_fallthru
          _
        // Predicated region
        $region25: #{tpu_custom_call.1} parent=11 // pred_check
          %p409 = pneg %p166
        $region26: #{tpu_custom_call.1} parent=11 // pred_check_branch
          %411 = sbr.rel (%p409) target = $region28
        $region27: #{tpu_custom_call.1} parent=11 // pred_region
          _
        $region28: #{tpu_custom_call.1} parent=11 // pred_fallthru
          _
        // Predicated region
        $region29: #{tpu_custom_call.1} parent=11 // pred_check
          %p412 = pneg %p187
        $region30: #{tpu_custom_call.1} parent=11 // pred_check_branch
          %414 = sbr.rel (%p412) target = $region32
        $region31: #{tpu_custom_call.1} parent=11 // pred_region
          _
        $region32: #{tpu_custom_call.1} parent=11 // pred_fallthru
          _
        // Predicated region
        $region33: #{tpu_custom_call.1} parent=11 // pred_check
          %p415 = pneg %p208
        $region34: #{tpu_custom_call.1} parent=11 // pred_check_branch
          %417 = sbr.rel (%p415) target = $region36
        $region35: #{tpu_custom_call.1} parent=11 // pred_region
          %s419 = ssub.s32 4096, 4096
          %420 = vsyncadd [#allocation6], %s419
          %s421 = sshll.u32 [#allocation7], 4
          %s422 = int_to_ptr.vmem [resolvable:$true] %s421
          %427 = dma.hbm_to_vmem [thread:$0]  %s7, 4096, %s422, [#allocation6], 128, 128, 8
        $region36: #{tpu_custom_call.1} parent=11 // pred_fallthru
          _
        // Predicated region
        $region37: #{tpu_custom_call.1} parent=11 // pred_check
          %p428 = pneg %p229
        $region38: #{tpu_custom_call.1} parent=11 // pred_check_branch
          %430 = sbr.rel (%p428) target = $region40
        $region39: #{tpu_custom_call.1} parent=11 // pred_region
          _
        $region40: #{tpu_custom_call.1} parent=11 // pred_fallthru
          _
        // Predicated region
        $region41: #{tpu_custom_call.1} parent=11 // pred_check
          %p431 = pneg %p250
        $region42: #{tpu_custom_call.1} parent=11 // pred_check_branch
          %433 = sbr.rel (%p431) target = $region44
        $region43: #{tpu_custom_call.1} parent=11 // pred_region
          %s435 = ssub.s32 4096, 4096
          %436 = vsyncadd [#allocation9], %s435
          %s437 = sshll.u32 [#allocation8], 4
          %s438 = int_to_ptr.vmem [resolvable:$true] %s437
          %443 = dma.hbm_to_vmem [thread:$0]  %s9, 4096, %s438, [#allocation9], 128, 128, 8
        $region44: #{tpu_custom_call.1} parent=11 // pred_fallthru
          _
        // Predicated region
        $region45: #{tpu_custom_call.1} parent=11 // pred_check
          %p444 = pneg %p271
        $region46: #{tpu_custom_call.1} parent=11 // pred_check_branch
          %446 = sbr.rel (%p444) target = $region48
        $region47: #{tpu_custom_call.1} parent=11 // pred_region
          _
        $region48: #{tpu_custom_call.1} parent=11 // pred_fallthru
          _
        // Predicated region
        $region49: #{tpu_custom_call.1} parent=11 // pred_check
          %p447 = pneg %p292
        $region50: #{tpu_custom_call.1} parent=11 // pred_check_branch
          %449 = sbr.rel (%p447) target = $region52
        $region51: #{tpu_custom_call.1} parent=11 // pred_region
          %s451 = ssub.s32 4096, 4096
          %452 = vsyncadd [#allocation9], %s451
          %s453 = sshll.u32 [#allocation10], 4
          %s454 = int_to_ptr.vmem [resolvable:$true] %s453
          %459 = dma.hbm_to_vmem [thread:$0]  %s11, 4096, %s454, [#allocation9], 128, 128, 8
        $region52: #{tpu_custom_call.1} parent=11 // pred_fallthru
          _
        // Predicated region
        $region53: #{tpu_custom_call.1} parent=11 // pred_check
          %p460 = pneg %p313
        $region54: #{tpu_custom_call.1} parent=11 // pred_check_branch
          %462 = sbr.rel (%p460) target = $region56
        $region55: #{tpu_custom_call.1} parent=11 // pred_region
          _
        $region56: #{tpu_custom_call.1} parent=11 // pred_fallthru
          _
      $region12: #{tpu_custom_call.1} parent=5 // pred_fallthru
        _
      %p463 = scmp.lt.s32.totalorder %s30, 2
      // Predicated region
      $region57: #{tpu_custom_call.1} parent=5 // pred_check
        %p464 = pneg %p463
      $region58: #{tpu_custom_call.1} parent=5 // pred_check_branch
        %466 = sbr.rel (%p464) target = $region60
      $region59: #{tpu_custom_call.1} parent=5 // pred_region
        // Predicated region
        $region61: #{tpu_custom_call.1} parent=59 // pred_check
          %p467 = pneg %p50
        $region62: #{tpu_custom_call.1} parent=59 // pred_check_branch
          %469 = sbr.rel (%p467) target = $region64
        $region63: #{tpu_custom_call.1} parent=59 // pred_region
          %s470 = smul.u32 8, %s30
          %p471 = scmp.lt.s32.totalorder %s470, 15
          %s472 = scalar_select %p471, %s470, 15
          %s473 = smul.addr %s472, 8
          %s474 = scalar_lea.vmem %s0, %s473
          %s475 = smul.u32 8, %s30
        $region64: #{tpu_custom_call.1} parent=59 // pred_fallthru
          _
        // Predicated region
        $region65: #{tpu_custom_call.1} parent=59 // pred_check
          %p476 = pneg %p76
        $region66: #{tpu_custom_call.1} parent=59 // pred_check_branch
          %478 = sbr.rel (%p476) target = $region68
        $region67: #{tpu_custom_call.1} parent=59 // pred_region
          %s479 = smul.u32 8, %s30
          %p480 = scmp.lt.s32.totalorder %s479, 15
          %s481 = scalar_select %p480, %s479, 15
          %s482 = smul.addr %s481, 8
          %s483 = scalar_lea.vmem %s1, %s482
          %s484 = smul.u32 8, %s30
        $region68: #{tpu_custom_call.1} parent=59 // pred_fallthru
          _
      $region60: #{tpu_custom_call.1} parent=5 // pred_fallthru
        _
      %p485 = scmp.le.s32.totalorder 1, %s30
      %p486 = scmp.lt.s32.totalorder %s30, 3
      %p487 = pnand %p485, %p486
      %p488 = pneg %p487
      // Predicated region
      $region69: #{tpu_custom_call.1} parent=5 // pred_check
        _
      $region70: #{tpu_custom_call.1} parent=5 // pred_check_branch
        %490 = sbr.rel (%p487) target = $region72
      $region71: #{tpu_custom_call.1} parent=5 // pred_region
        %s491 = ssub.s32 %s30, 1
        // Predicated region
        $region73: #{tpu_custom_call.1} parent=71 // pred_check
          %p492 = pneg %p103
        $region74: #{tpu_custom_call.1} parent=71 // pred_check_branch
          %494 = sbr.rel (%p492) target = $region76
        $region75: #{tpu_custom_call.1} parent=71 // pred_region
          %495 = dma.done [#allocation3], 2048
        $region76: #{tpu_custom_call.1} parent=71 // pred_fallthru
          _
        // Predicated region
        $region77: #{tpu_custom_call.1} parent=71 // pred_check
          %p496 = pneg %p145
        $region78: #{tpu_custom_call.1} parent=71 // pred_check_branch
          %498 = sbr.rel (%p496) target = $region80
        $region79: #{tpu_custom_call.1} parent=71 // pred_region
          %499 = dma.done [#allocation6], 4096
        $region80: #{tpu_custom_call.1} parent=71 // pred_fallthru
          _
        // Predicated region
        $region81: #{tpu_custom_call.1} parent=71 // pred_check
          %p500 = pneg %p208
        $region82: #{tpu_custom_call.1} parent=71 // pred_check_branch
          %502 = sbr.rel (%p500) target = $region84
        $region83: #{tpu_custom_call.1} parent=71 // pred_region
          %503 = dma.done [#allocation6], 4096
        $region84: #{tpu_custom_call.1} parent=71 // pred_fallthru
          _
        // Predicated region
        $region85: #{tpu_custom_call.1} parent=71 // pred_check
          %p504 = pneg %p250
        $region86: #{tpu_custom_call.1} parent=71 // pred_check_branch
          %506 = sbr.rel (%p504) target = $region88
        $region87: #{tpu_custom_call.1} parent=71 // pred_region
          %507 = dma.done [#allocation9], 4096
        $region88: #{tpu_custom_call.1} parent=71 // pred_fallthru
          _
        // Predicated region
        $region89: #{tpu_custom_call.1} parent=71 // pred_check
          %p508 = pneg %p292
        $region90: #{tpu_custom_call.1} parent=71 // pred_check_branch
          %510 = sbr.rel (%p508) target = $region92
        $region91: #{tpu_custom_call.1} parent=71 // pred_region
          %511 = dma.done [#allocation9], 4096
        $region92: #{tpu_custom_call.1} parent=71 // pred_fallthru
          _
        %s512 = smul.u32 8, %s35
        %p513 = scmp.lt.s32.totalorder %s512, 15
        %s514 = scalar_select %p513, %s512, 15
        %s515 = smul.addr %s514, 8
        %s516 = scalar_lea.vmem %s0, %s515
        %p517 = pneg %p56
        %p518 = pneg %p53
        %s519 = smul.u32 8, %s35
        %p520 = scmp.lt.s32.totalorder %s519, 15
        %s521 = scalar_select %p520, %s519, 15
        %s522 = smul.addr %s521, 8
        %s523 = scalar_lea.vmem %s1, %s522
        %p524 = pneg %p82
        %p525 = pneg %p79
        %p526 = pneg %p103
        %p527 = pneg %p100
        %p528 = pneg %p124
        %p529 = pneg %p121
        %p530 = pneg %p145
        %p531 = pneg %p142
        %p532 = pneg %p166
        %p533 = pneg %p163
        %p534 = pneg %p187
        %p535 = pneg %p184
        %p536 = pneg %p208
        %p537 = pneg %p205
        %p538 = pneg %p229
        %p539 = pneg %p226
        %p540 = pneg %p250
        %p541 = pneg %p247
        %p542 = pneg %p271
        %p543 = pneg %p268
        %p544 = pneg %p292
        %p545 = pneg %p289
        %p546 = pneg %p313
        %p547 = pneg %p310
        %p548 = pneg %p339
        %p549 = pneg %p336
        %s550 = sand.u32 %s326, 1
        %s551 = scalar_lea.sflag [#allocation4], %s550
        %s552 = sand.u32 %s326, 1
        %s553 = smul.addr %s552, 64
        %s554 = scalar_lea.vmem [#allocation11], %s553
        %p555 = pneg %p365
        %p556 = pneg %p362
        %s557 = sand.u32 %s352, 1
        %s558 = scalar_lea.sflag [#allocation13], %s557
        %s559 = sand.u32 %s352, 1
        %s560 = smul.addr %s559, 64
        %s561 = scalar_lea.vmem [#allocation12], %s560
        %s562 = smul.u32 8, %s35
        %p563 = scmp.lt.s32.totalorder %s562, 15
        %s564 = scalar_select %p563, %s562, 15
        %s565 = smul.addr %s564, 8
        %s566 = scalar_lea.vmem %s0, %s565
        %s567 = smul.u32 8, %s35
        %s568 = smul.u32 8, %s35
        %p569 = scmp.lt.s32.totalorder %s568, 15
        %s570 = scalar_select %p569, %s568, 15
        %s571 = smul.addr %s570, 8
        %s572 = scalar_lea.vmem %s1, %s571
        %s573 = smul.u32 8, %s35
        %s574 = smul.u32 8, %s35
        %s575 = smul.u32 8, %s35
        %v577 = vld [vmem:[%s566] sm:$0xff]
        %v578 = vld [vmem:[%s566 + $0x8] sm:$0xff]
        %v579 = vld [vmem:[%s566 + $0x10] sm:$0xff]
        %v580 = vld [vmem:[%s566 + $0x18] sm:$0xff]
        %v581 = vld [vmem:[%s566 + $0x20] sm:$0xff]
        %v582 = vld [vmem:[%s566 + $0x28] sm:$0xff]
        %v583 = vld [vmem:[%s566 + $0x30] sm:$0xff]
        %v584 = vld [vmem:[%s566 + $0x38] sm:$0xff]
        %v585 = vpack.c.bf16 %v578, %v577
        %v586 = vpack.c.bf16 %v580, %v579
        %v587 = vpack.c.bf16 %v582, %v581
        %v588 = vpack.c.bf16 %v584, %v583
        %v589 = vld [vmem:[#allocation2] sm:$0xff]
        %v590 = vld [vmem:[#allocation2 + $0x8] sm:$0xff]
        %v591 = vld [vmem:[#allocation2 + $0x10] sm:$0xff]
        %v592 = vld [vmem:[#allocation2 + $0x18] sm:$0xff]
        %v593 = vld [vmem:[#allocation2 + $0x20] sm:$0xff]
        %v594 = vld [vmem:[#allocation2 + $0x28] sm:$0xff]
        %v595 = vld [vmem:[#allocation2 + $0x30] sm:$0xff]
        %v596 = vld [vmem:[#allocation2 + $0x38] sm:$0xff]
        %v597 = vld [vmem:[#allocation2 + $0x40] sm:$0xff]
        %v598 = vld [vmem:[#allocation2 + $0x48] sm:$0xff]
        %v599 = vld [vmem:[#allocation2 + $0x50] sm:$0xff]
        %v600 = vld [vmem:[#allocation2 + $0x58] sm:$0xff]
        %v601 = vld [vmem:[#allocation2 + $0x60] sm:$0xff]
        %v602 = vld [vmem:[#allocation2 + $0x68] sm:$0xff]
        %v603 = vld [vmem:[#allocation2 + $0x70] sm:$0xff]
        %v604 = vld [vmem:[#allocation2 + $0x78] sm:$0xff]
        %v605 = vld [vmem:[%s572] sm:$0xff]
        %v606 = vld [vmem:[%s572 + $0x8] sm:$0xff]
        %v607 = vld [vmem:[%s572 + $0x10] sm:$0xff]
        %v608 = vld [vmem:[%s572 + $0x18] sm:$0xff]
        %v609 = vld [vmem:[%s572 + $0x20] sm:$0xff]
        %v610 = vld [vmem:[%s572 + $0x28] sm:$0xff]
        %v611 = vld [vmem:[%s572 + $0x30] sm:$0xff]
        %v612 = vld [vmem:[%s572 + $0x38] sm:$0xff]
        %v613 = vpack.c.bf16 %v606, %v605
        %v614 = vpack.c.bf16 %v608, %v607
        %v615 = vpack.c.bf16 %v610, %v609
        %v616 = vpack.c.bf16 %v612, %v611
        %v617 = vld [vmem:[%s3] sm:$0xff]
        %v618 = vld [vmem:[%s3 + $0x8] sm:$0xff]
        %v619 = vld [vmem:[%s3 + $0x10] sm:$0xff]
        %v620 = vld [vmem:[%s3 + $0x18] sm:$0xff]
        %v621 = vld [vmem:[%s3 + $0x20] sm:$0xff]
        %v622 = vld [vmem:[%s3 + $0x28] sm:$0xff]
        %v623 = vld [vmem:[%s3 + $0x30] sm:$0xff]
        %v624 = vld [vmem:[%s3 + $0x38] sm:$0xff]
        %v633 = vunpack.c.l.b16 %v617
        %v634 = vunpack.c.h.b16 %v617
        %v635 = vunpack.c.l.b16 %v618
        %v636 = vunpack.c.h.b16 %v618
        %v637 = vunpack.c.l.b16 %v619
        %v638 = vunpack.c.h.b16 %v619
        %v639 = vunpack.c.l.b16 %v620
        %v640 = vunpack.c.h.b16 %v620
        %v641 = vunpack.c.l.b16 %v621
        %v642 = vunpack.c.h.b16 %v621
        %v643 = vunpack.c.l.b16 %v622
        %v644 = vunpack.c.h.b16 %v622
        %v645 = vunpack.c.l.b16 %v623
        %v646 = vunpack.c.h.b16 %v623
        %v647 = vunpack.c.l.b16 %v624
        %v648 = vunpack.c.h.b16 %v624
        %v649 = vpack.c.b16 %v635, %v633
        %v650 = vpack.c.b16 %v636, %v634
        %v651 = vpack.c.b16 %v639, %v637
        %v652 = vpack.c.b16 %v640, %v638
        %v653 = vpack.c.b16 %v643, %v641
        %v654 = vpack.c.b16 %v644, %v642
        %v655 = vpack.c.b16 %v647, %v645
        %v656 = vpack.c.b16 %v648, %v646
        %vm665 = vcmask 523264
        %v667 = vsel %vm665, %v613, 0
        %v670 = vsel %vm665, %v614, 0
        %v673 = vsel %vm665, %v615, 0
        %v676 = vsel %vm665, %v616, 0
        %678 = vmatprep.subr.bf16.mxu0 0
        %679 = vmatpush1.bf16.msra.mxu0 0
        %680 = vmatprep.subr.bf16.mxu0 0
        %681 = vmatpush1.bf16.msra.mxu0 0
        %682 = vmatprep.subr.bf16.mxu0 0
        %683 = vmatpush1.bf16.msra.mxu0 0
        %684 = vmatprep.subr.bf16.mxu0 0
        %685 = vmatpush1.bf16.msra.mxu0 0
        %686 = vmatprep.subr.bf16.mxu0 %v656
        %687 = vmatpush1.bf16.msra.mxu0 %v655
        %688 = vmatprep.subr.bf16.mxu0 %v654
        %689 = vmatpush1.bf16.msra.mxu0 %v653
        %690 = vmatprep.subr.bf16.mxu0 %v652
        %691 = vmatpush1.bf16.msra.mxu0 %v651
        %692 = vmatprep.subr.bf16.mxu0 %v650
        %693 = vmatpush1.bf16.msra.mxu0 %v649
        %694 = vmatprep.subr.bf16.mxu0 0
        %695 = vmatpush2.bf16.msra.mxu0 0
        %696 = vmatprep.subr.bf16.mxu0 0
        %697 = vmatpush2.bf16.msra.mxu0 0
        %698 = vmatprep.subr.bf16.mxu0 0
        %699 = vmatpush2.bf16.msra.mxu0 0
        %700 = vmatprep.subr.bf16.mxu0 0
        %701 = vmatpush2.bf16.msra.mxu0 0
        %702 = vmatprep.subr.bf16.mxu0 0
        %703 = vmatpush2.bf16.msra.mxu0 0
        %704 = vmatprep.subr.bf16.mxu0 0
        %705 = vmatpush2.bf16.msra.mxu0 0
        %706 = vmatprep.subr.bf16.mxu0 0
        %707 = vmatpush2.bf16.msra.mxu0 0
        %708 = vmatprep.subr.bf16.mxu0 0
        %709 = vmatpush2.bf16.msra.mxu0 0
        %710 = vmatprep.mubr.bf16.mxu0 0
        %711 = vmatmul.mubr.bf16.gmra.mxu0 %v667
        %v712 = vpop.f32.mrf.mxu0
        %v713 = vadd.f32 0.0, %v712
        %v714 = vpop.f32.mrf.mxu0
        %v715 = vadd.f32 0.0, %v714
        %v716 = vpop.f32.mrf.mxu0
        %v717 = vadd.f32 0.0, %v716
        %v718 = vpop.f32.mrf.mxu0
        %v719 = vadd.f32 0.0, %v718
        %720 = vmatprep.mubr.bf16.mxu0 0
        %721 = vmatmul.mubr.bf16.gmra.mxu0 %v670
        %v722 = vpop.f32.mrf.mxu0
        %v723 = vadd.f32 0.0, %v722
        %v724 = vpop.f32.mrf.mxu0
        %v725 = vadd.f32 0.0, %v724
        %v726 = vpop.f32.mrf.mxu0
        %v727 = vadd.f32 0.0, %v726
        %v728 = vpop.f32.mrf.mxu0
        %v729 = vadd.f32 0.0, %v728
        %730 = vmatprep.mubr.bf16.mxu0 0
        %731 = vmatmul.mubr.bf16.gmra.mxu0 %v673
        %v732 = vpop.f32.mrf.mxu0
        %v733 = vadd.f32 0.0, %v732
        %v734 = vpop.f32.mrf.mxu0
        %v735 = vadd.f32 0.0, %v734
        %v736 = vpop.f32.mrf.mxu0
        %v737 = vadd.f32 0.0, %v736
        %v738 = vpop.f32.mrf.mxu0
        %v739 = vadd.f32 0.0, %v738
        %740 = vmatprep.mubr.bf16.mxu0 0
        %741 = vmatmul.mubr.bf16.gmra.mxu0 %v676
        %v742 = vpop.f32.mrf.mxu0
        %v743 = vadd.f32 0.0, %v742
        %v744 = vpop.f32.mrf.mxu0
        %v745 = vadd.f32 0.0, %v744
        %v746 = vpop.f32.mrf.mxu0
        %v747 = vadd.f32 0.0, %v746
        %v748 = vpop.f32.mrf.mxu0
        %v749 = vadd.f32 0.0, %v748
        %750 = vdwg.mxu0
        %v767 = vunpack.c.l.b16 %v589
        %v768 = vunpack.c.h.b16 %v589
        %v769 = vunpack.c.l.b16 %v590
        %v770 = vunpack.c.h.b16 %v590
        %v771 = vunpack.c.l.b16 %v591
        %v772 = vunpack.c.h.b16 %v591
        %v773 = vunpack.c.l.b16 %v592
        %v774 = vunpack.c.h.b16 %v592
        %v775 = vunpack.c.l.b16 %v593
        %v776 = vunpack.c.h.b16 %v593
        %v777 = vunpack.c.l.b16 %v594
        %v778 = vunpack.c.h.b16 %v594
        %v779 = vunpack.c.l.b16 %v595
        %v780 = vunpack.c.h.b16 %v595
        %v781 = vunpack.c.l.b16 %v596
        %v782 = vunpack.c.h.b16 %v596
        %v783 = vunpack.c.l.b16 %v597
        %v784 = vunpack.c.h.b16 %v597
        %v785 = vunpack.c.l.b16 %v598
        %v786 = vunpack.c.h.b16 %v598
        %v787 = vunpack.c.l.b16 %v599
        %v788 = vunpack.c.h.b16 %v599
        %v789 = vunpack.c.l.b16 %v600
        %v790 = vunpack.c.h.b16 %v600
        %v791 = vunpack.c.l.b16 %v601
        %v792 = vunpack.c.h.b16 %v601
        %v793 = vunpack.c.l.b16 %v602
        %v794 = vunpack.c.h.b16 %v602
        %v795 = vunpack.c.l.b16 %v603
        %v796 = vunpack.c.h.b16 %v603
        %v797 = vunpack.c.l.b16 %v604
        %v798 = vunpack.c.h.b16 %v604
        %v799 = vpack.c.b16 %v769, %v767
        %v800 = vpack.c.b16 %v770, %v768
        %v801 = vpack.c.b16 %v773, %v771
        %v802 = vpack.c.b16 %v774, %v772
        %v803 = vpack.c.b16 %v777, %v775
        %v804 = vpack.c.b16 %v778, %v776
        %v805 = vpack.c.b16 %v781, %v779
        %v806 = vpack.c.b16 %v782, %v780
        %v807 = vpack.c.b16 %v785, %v783
        %v808 = vpack.c.b16 %v786, %v784
        %v809 = vpack.c.b16 %v789, %v787
        %v810 = vpack.c.b16 %v790, %v788
        %v811 = vpack.c.b16 %v793, %v791
        %v812 = vpack.c.b16 %v794, %v792
        %v813 = vpack.c.b16 %v797, %v795
        %v814 = vpack.c.b16 %v798, %v796
        %831 = vmatprep.subr.bf16.mxu0 %v814
        %832 = vmatpush1.bf16.msra.mxu0 %v813
        %833 = vmatprep.subr.bf16.mxu0 %v812
        %834 = vmatpush1.bf16.msra.mxu0 %v811
        %835 = vmatprep.subr.bf16.mxu0 %v810
        %836 = vmatpush1.bf16.msra.mxu0 %v809
        %837 = vmatprep.subr.bf16.mxu0 %v808
        %838 = vmatpush1.bf16.msra.mxu0 %v807
        %839 = vmatprep.subr.bf16.mxu0 %v806
        %840 = vmatpush1.bf16.msra.mxu0 %v805
        %841 = vmatprep.subr.bf16.mxu0 %v804
        %842 = vmatpush1.bf16.msra.mxu0 %v803
        %843 = vmatprep.subr.bf16.mxu0 %v802
        %844 = vmatpush1.bf16.msra.mxu0 %v801
        %845 = vmatprep.subr.bf16.mxu0 %v800
        %846 = vmatpush1.bf16.msra.mxu0 %v799
        %847 = vmatprep.subr.bf16.mxu0 0
        %848 = vmatpush2.bf16.msra.mxu0 0
        %849 = vmatprep.subr.bf16.mxu0 0
        %850 = vmatpush2.bf16.msra.mxu0 0
        %851 = vmatprep.subr.bf16.mxu0 0
        %852 = vmatpush2.bf16.msra.mxu0 0
        %853 = vmatprep.subr.bf16.mxu0 0
        %854 = vmatpush2.bf16.msra.mxu0 0
        %855 = vmatprep.subr.bf16.mxu0 0
        %856 = vmatpush2.bf16.msra.mxu0 0
        %857 = vmatprep.subr.bf16.mxu0 0
        %858 = vmatpush2.bf16.msra.mxu0 0
        %859 = vmatprep.subr.bf16.mxu0 0
        %860 = vmatpush2.bf16.msra.mxu0 0
        %861 = vmatprep.subr.bf16.mxu0 0
        %862 = vmatpush2.bf16.msra.mxu0 0
        %863 = vmatprep.mubr.bf16.mxu0 0
        %864 = vmatmul.mubr.bf16.gmra.mxu0 %v585
        %v865 = vpop.f32.mrf.mxu0
        %v866 = vadd.f32 %v713, %v865
        %v867 = vpop.f32.mrf.mxu0
        %v868 = vadd.f32 %v715, %v867
        %v869 = vpop.f32.mrf.mxu0
        %v870 = vadd.f32 %v717, %v869
        %v871 = vpop.f32.mrf.mxu0
        %v872 = vadd.f32 %v719, %v871
        %873 = vmatprep.mubr.bf16.mxu0 0
        %874 = vmatmul.mubr.bf16.gmra.mxu0 %v586
        %v875 = vpop.f32.mrf.mxu0
        %v876 = vadd.f32 %v723, %v875
        %v877 = vpop.f32.mrf.mxu0
        %v878 = vadd.f32 %v725, %v877
        %v879 = vpop.f32.mrf.mxu0
        %v880 = vadd.f32 %v727, %v879
        %v881 = vpop.f32.mrf.mxu0
        %v882 = vadd.f32 %v729, %v881
        %883 = vmatprep.mubr.bf16.mxu0 0
        %884 = vmatmul.mubr.bf16.gmra.mxu0 %v587
        %v885 = vpop.f32.mrf.mxu0
        %v886 = vadd.f32 %v733, %v885
        %v887 = vpop.f32.mrf.mxu0
        %v888 = vadd.f32 %v735, %v887
        %v889 = vpop.f32.mrf.mxu0
        %v890 = vadd.f32 %v737, %v889
        %v891 = vpop.f32.mrf.mxu0
        %v892 = vadd.f32 %v739, %v891
        %893 = vmatprep.mubr.bf16.mxu0 0
        %894 = vmatmul.mubr.bf16.gmra.mxu0 %v588
        %v895 = vpop.f32.mrf.mxu0
        %v896 = vadd.f32 %v743, %v895
        %v897 = vpop.f32.mrf.mxu0
        %v898 = vadd.f32 %v745, %v897
        %v899 = vpop.f32.mrf.mxu0
        %v900 = vadd.f32 %v747, %v899
        %v901 = vpop.f32.mrf.mxu0
        %v902 = vadd.f32 %v749, %v901
        %903 = vdwg.mxu0
        %v904 = vpack.c.bf16 %v870, %v866
        %v905 = vpack.c.bf16 %v872, %v868
        %v906 = vpack.c.bf16 %v880, %v876
        %v907 = vpack.c.bf16 %v882, %v878
        %v908 = vpack.c.bf16 %v890, %v886
        %v909 = vpack.c.bf16 %v892, %v888
        %v910 = vpack.c.bf16 %v900, %v896
        %v911 = vpack.c.bf16 %v902, %v898
        %v912 = vld [vmem:[#allocation5] sm:$0xff]
        %v913 = vld [vmem:[#allocation5 + $0x8] sm:$0xff]
        %v914 = vld [vmem:[#allocation5 + $0x10] sm:$0xff]
        %v915 = vld [vmem:[#allocation5 + $0x18] sm:$0xff]
        %v916 = vld [vmem:[#allocation5 + $0x20] sm:$0xff]
        %v917 = vld [vmem:[#allocation5 + $0x28] sm:$0xff]
        %v918 = vld [vmem:[#allocation5 + $0x30] sm:$0xff]
        %v919 = vld [vmem:[#allocation5 + $0x38] sm:$0xff]
        %v920 = vld [vmem:[#allocation5 + $0x40] sm:$0xff]
        %v921 = vld [vmem:[#allocation5 + $0x48] sm:$0xff]
        %v922 = vld [vmem:[#allocation5 + $0x50] sm:$0xff]
        %v923 = vld [vmem:[#allocation5 + $0x58] sm:$0xff]
        %v924 = vld [vmem:[#allocation5 + $0x60] sm:$0xff]
        %v925 = vld [vmem:[#allocation5 + $0x68] sm:$0xff]
        %v926 = vld [vmem:[#allocation5 + $0x70] sm:$0xff]
        %v927 = vld [vmem:[#allocation5 + $0x78] sm:$0xff]
        %v928 = vld [vmem:[#allocation5 + $0x80] sm:$0xff]
        %v929 = vld [vmem:[#allocation5 + $0x88] sm:$0xff]
        %v930 = vld [vmem:[#allocation5 + $0x90] sm:$0xff]
        %v931 = vld [vmem:[#allocation5 + $0x98] sm:$0xff]
        %v932 = vld [vmem:[#allocation5 + $0xa0] sm:$0xff]
        %v933 = vld [vmem:[#allocation5 + $0xa8] sm:$0xff]
        %v934 = vld [vmem:[#allocation5 + $0xb0] sm:$0xff]
        %v935 = vld [vmem:[#allocation5 + $0xb8] sm:$0xff]
        %v936 = vld [vmem:[#allocation5 + $0xc0] sm:$0xff]
        %v937 = vld [vmem:[#allocation5 + $0xc8] sm:$0xff]
        %v938 = vld [vmem:[#allocation5 + $0xd0] sm:$0xff]
        %v939 = vld [vmem:[#allocation5 + $0xd8] sm:$0xff]
        %v940 = vld [vmem:[#allocation5 + $0xe0] sm:$0xff]
        %v941 = vld [vmem:[#allocation5 + $0xe8] sm:$0xff]
        %v942 = vld [vmem:[#allocation5 + $0xf0] sm:$0xff]
        %v943 = vld [vmem:[#allocation5 + $0xf8] sm:$0xff]
        %v976 = vunpack.c.l.b16 %v912
        %v977 = vunpack.c.h.b16 %v912
        %v978 = vunpack.c.l.b16 %v913
        %v979 = vunpack.c.h.b16 %v913
        %v980 = vunpack.c.l.b16 %v914
        %v981 = vunpack.c.h.b16 %v914
        %v982 = vunpack.c.l.b16 %v915
        %v983 = vunpack.c.h.b16 %v915
        %v984 = vunpack.c.l.b16 %v916
        %v985 = vunpack.c.h.b16 %v916
        %v986 = vunpack.c.l.b16 %v917
        %v987 = vunpack.c.h.b16 %v917
        %v988 = vunpack.c.l.b16 %v918
        %v989 = vunpack.c.h.b16 %v918
        %v990 = vunpack.c.l.b16 %v919
        %v991 = vunpack.c.h.b16 %v919
        %v992 = vunpack.c.l.b16 %v920
        %v993 = vunpack.c.h.b16 %v920
        %v994 = vunpack.c.l.b16 %v921
        %v995 = vunpack.c.h.b16 %v921
        %v996 = vunpack.c.l.b16 %v922
        %v997 = vunpack.c.h.b16 %v922
        %v998 = vunpack.c.l.b16 %v923
        %v999 = vunpack.c.h.b16 %v923
        %v1000 = vunpack.c.l.b16 %v924
        %v1001 = vunpack.c.h.b16 %v924
        %v1002 = vunpack.c.l.b16 %v925
        %v1003 = vunpack.c.h.b16 %v925
        %v1004 = vunpack.c.l.b16 %v926
        %v1005 = vunpack.c.h.b16 %v926
        %v1006 = vunpack.c.l.b16 %v927
        %v1007 = vunpack.c.h.b16 %v927
        %v1008 = vunpack.c.l.b16 %v928
        %v1009 = vunpack.c.h.b16 %v928
        %v1010 = vunpack.c.l.b16 %v929
        %v1011 = vunpack.c.h.b16 %v929
        %v1012 = vunpack.c.l.b16 %v930
        %v1013 = vunpack.c.h.b16 %v930
        %v1014 = vunpack.c.l.b16 %v931
        %v1015 = vunpack.c.h.b16 %v931
        %v1016 = vunpack.c.l.b16 %v932
        %v1017 = vunpack.c.h.b16 %v932
        %v1018 = vunpack.c.l.b16 %v933
        %v1019 = vunpack.c.h.b16 %v933
        %v1020 = vunpack.c.l.b16 %v934
        %v1021 = vunpack.c.h.b16 %v934
        %v1022 = vunpack.c.l.b16 %v935
        %v1023 = vunpack.c.h.b16 %v935
        %v1024 = vunpack.c.l.b16 %v936
        %v1025 = vunpack.c.h.b16 %v936
        %v1026 = vunpack.c.l.b16 %v937
        %v1027 = vunpack.c.h.b16 %v937
        %v1028 = vunpack.c.l.b16 %v938
        %v1029 = vunpack.c.h.b16 %v938
        %v1030 = vunpack.c.l.b16 %v939
        %v1031 = vunpack.c.h.b16 %v939
        %v1032 = vunpack.c.l.b16 %v940
        %v1033 = vunpack.c.h.b16 %v940
        %v1034 = vunpack.c.l.b16 %v941
        %v1035 = vunpack.c.h.b16 %v941
        %v1036 = vunpack.c.l.b16 %v942
        %v1037 = vunpack.c.h.b16 %v942
        %v1038 = vunpack.c.l.b16 %v943
        %v1039 = vunpack.c.h.b16 %v943
        %v1040 = vpack.c.b16 %v978, %v976
        %v1041 = vpack.c.b16 %v979, %v977
        %v1042 = vpack.c.b16 %v982, %v980
        %v1043 = vpack.c.b16 %v983, %v981
        %v1044 = vpack.c.b16 %v986, %v984
        %v1045 = vpack.c.b16 %v987, %v985
        %v1046 = vpack.c.b16 %v990, %v988
        %v1047 = vpack.c.b16 %v991, %v989
        %v1048 = vpack.c.b16 %v994, %v992
        %v1049 = vpack.c.b16 %v995, %v993
        %v1050 = vpack.c.b16 %v998, %v996
        %v1051 = vpack.c.b16 %v999, %v997
        %v1052 = vpack.c.b16 %v1002, %v1000
        %v1053 = vpack.c.b16 %v1003, %v1001
        %v1054 = vpack.c.b16 %v1006, %v1004
        %v1055 = vpack.c.b16 %v1007, %v1005
        %v1056 = vpack.c.b16 %v1010, %v1008
        %v1057 = vpack.c.b16 %v1011, %v1009
        %v1058 = vpack.c.b16 %v1014, %v1012
        %v1059 = vpack.c.b16 %v1015, %v1013
        %v1060 = vpack.c.b16 %v1018, %v1016
        %v1061 = vpack.c.b16 %v1019, %v1017
        %v1062 = vpack.c.b16 %v1022, %v1020
        %v1063 = vpack.c.b16 %v1023, %v1021
        %v1064 = vpack.c.b16 %v1026, %v1024
        %v1065 = vpack.c.b16 %v1027, %v1025
        %v1066 = vpack.c.b16 %v1030, %v1028
        %v1067 = vpack.c.b16 %v1031, %v1029
        %v1068 = vpack.c.b16 %v1034, %v1032
        %v1069 = vpack.c.b16 %v1035, %v1033
        %v1070 = vpack.c.b16 %v1038, %v1036
        %v1071 = vpack.c.b16 %v1039, %v1037
        %1104 = vmatprep.subr.bf16.mxu0 %v1055
        %1105 = vmatpush1.bf16.msra.mxu0 %v1054
        %1106 = vmatprep.subr.bf16.mxu0 %v1053
        %1107 = vmatpush1.bf16.msra.mxu0 %v1052
        %1108 = vmatprep.subr.bf16.mxu0 %v1051
        %1109 = vmatpush1.bf16.msra.mxu0 %v1050
        %1110 = vmatprep.subr.bf16.mxu0 %v1049
        %1111 = vmatpush1.bf16.msra.mxu0 %v1048
        %1112 = vmatprep.subr.bf16.mxu0 %v1047
        %1113 = vmatpush1.bf16.msra.mxu0 %v1046
        %1114 = vmatprep.subr.bf16.mxu0 %v1045
        %1115 = vmatpush1.bf16.msra.mxu0 %v1044
        %1116 = vmatprep.subr.bf16.mxu0 %v1043
        %1117 = vmatpush1.bf16.msra.mxu0 %v1042
        %1118 = vmatprep.subr.bf16.mxu0 %v1041
        %1119 = vmatpush1.bf16.msra.mxu0 %v1040
        %1120 = vmatprep.subr.bf16.mxu0 %v1071
        %1121 = vmatpush2.bf16.msra.mxu0 %v1070
        %1122 = vmatprep.subr.bf16.mxu0 %v1069
        %1123 = vmatpush2.bf16.msra.mxu0 %v1068
        %1124 = vmatprep.subr.bf16.mxu0 %v1067
        %1125 = vmatpush2.bf16.msra.mxu0 %v1066
        %1126 = vmatprep.subr.bf16.mxu0 %v1065
        %1127 = vmatpush2.bf16.msra.mxu0 %v1064
        %1128 = vmatprep.subr.bf16.mxu0 %v1063
        %1129 = vmatpush2.bf16.msra.mxu0 %v1062
        %1130 = vmatprep.subr.bf16.mxu0 %v1061
        %1131 = vmatpush2.bf16.msra.mxu0 %v1060
        %1132 = vmatprep.subr.bf16.mxu0 %v1059
        %1133 = vmatpush2.bf16.msra.mxu0 %v1058
        %1134 = vmatprep.subr.bf16.mxu0 %v1057
        %1135 = vmatpush2.bf16.msra.mxu0 %v1056
        %1136 = vmatprep.mubr.bf16.mxu0 %v905
        %1137 = vmatmul.mubr.bf16.gmra.mxu0 %v904
        %v1138 = vpop.f32.mrf.mxu0
        %v1139 = vadd.f32 0.0, %v1138
        %v1140 = vpop.f32.mrf.mxu0
        %v1141 = vadd.f32 0.0, %v1140
        %v1142 = vpop.f32.mrf.mxu0
        %v1143 = vadd.f32 0.0, %v1142
        %v1144 = vpop.f32.mrf.mxu0
        %v1145 = vadd.f32 0.0, %v1144
        %1146 = vmatprep.mubr.bf16.mxu0 %v907
        %1147 = vmatmul.mubr.bf16.gmra.mxu0 %v906
        %v1148 = vpop.f32.mrf.mxu0
        %v1149 = vadd.f32 0.0, %v1148
        %v1150 = vpop.f32.mrf.mxu0
        %v1151 = vadd.f32 0.0, %v1150
        %v1152 = vpop.f32.mrf.mxu0
        %v1153 = vadd.f32 0.0, %v1152
        %v1154 = vpop.f32.mrf.mxu0
        %v1155 = vadd.f32 0.0, %v1154
        %1156 = vmatprep.mubr.bf16.mxu0 %v909
        %1157 = vmatmul.mubr.bf16.gmra.mxu0 %v908
        %v1158 = vpop.f32.mrf.mxu0
        %v1159 = vadd.f32 0.0, %v1158
        %v1160 = vpop.f32.mrf.mxu0
        %v1161 = vadd.f32 0.0, %v1160
        %v1162 = vpop.f32.mrf.mxu0
        %v1163 = vadd.f32 0.0, %v1162
        %v1164 = vpop.f32.mrf.mxu0
        %v1165 = vadd.f32 0.0, %v1164
        %1166 = vmatprep.mubr.bf16.mxu0 %v911
        %1167 = vmatmul.mubr.bf16.gmra.mxu0 %v910
        %v1168 = vpop.f32.mrf.mxu0
        %v1169 = vadd.f32 0.0, %v1168
        %v1170 = vpop.f32.mrf.mxu0
        %v1171 = vadd.f32 0.0, %v1170
        %v1172 = vpop.f32.mrf.mxu0
        %v1173 = vadd.f32 0.0, %v1172
        %v1174 = vpop.f32.mrf.mxu0
        %v1175 = vadd.f32 0.0, %v1174
        %1176 = vdwg.mxu0
        %v1177 = vsub.f32 %v866, %v1139
        %v1178 = vsub.f32 %v868, %v1141
        %v1179 = vsub.f32 %v870, %v1143
        %v1180 = vsub.f32 %v872, %v1145
        %v1181 = vsub.f32 %v876, %v1149
        %v1182 = vsub.f32 %v878, %v1151
        %v1183 = vsub.f32 %v880, %v1153
        %v1184 = vsub.f32 %v882, %v1155
        %v1185 = vsub.f32 %v886, %v1159
        %v1186 = vsub.f32 %v888, %v1161
        %v1187 = vsub.f32 %v890, %v1163
        %v1188 = vsub.f32 %v892, %v1165
        %v1189 = vsub.f32 %v896, %v1169
        %v1190 = vsub.f32 %v898, %v1171
        %v1191 = vsub.f32 %v900, %v1173
        %v1192 = vsub.f32 %v902, %v1175
        %v1193 = vmul.f32 %v1177, %v1177
        %v1194 = vmul.f32 %v1178, %v1178
        %v1195 = vmul.f32 %v1179, %v1179
        %v1196 = vmul.f32 %v1180, %v1180
        %v1197 = vmul.f32 %v1181, %v1181
        %v1198 = vmul.f32 %v1182, %v1182
        %v1199 = vmul.f32 %v1183, %v1183
        %v1200 = vmul.f32 %v1184, %v1184
        %v1201 = vmul.f32 %v1185, %v1185
        %v1202 = vmul.f32 %v1186, %v1186
        %v1203 = vmul.f32 %v1187, %v1187
        %v1204 = vmul.f32 %v1188, %v1188
        %v1205 = vmul.f32 %v1189, %v1189
        %v1206 = vmul.f32 %v1190, %v1190
        %v1207 = vmul.f32 %v1191, %v1191
        %v1208 = vmul.f32 %v1192, %v1192
        %v1209 = vpack.c.bf16 %v1195, %v1193
        %v1210 = vpack.c.bf16 %v1196, %v1194
        %v1211 = vpack.c.bf16 %v1199, %v1197
        %v1212 = vpack.c.bf16 %v1200, %v1198
        %v1213 = vpack.c.bf16 %v1203, %v1201
        %v1214 = vpack.c.bf16 %v1204, %v1202
        %v1215 = vpack.c.bf16 %v1207, %v1205
        %v1216 = vpack.c.bf16 %v1208, %v1206
        %1217 = vmatprep.subr.bf16.mxu0 %v1055
        %1218 = vmatpush1.bf16.msra.mxu0 %v1054
        %1219 = vmatprep.subr.bf16.mxu0 %v1053
        %1220 = vmatpush1.bf16.msra.mxu0 %v1052
        %1221 = vmatprep.subr.bf16.mxu0 %v1051
        %1222 = vmatpush1.bf16.msra.mxu0 %v1050
        %1223 = vmatprep.subr.bf16.mxu0 %v1049
        %1224 = vmatpush1.bf16.msra.mxu0 %v1048
        %1225 = vmatprep.subr.bf16.mxu0 %v1047
        %1226 = vmatpush1.bf16.msra.mxu0 %v1046
        %1227 = vmatprep.subr.bf16.mxu0 %v1045
        %1228 = vmatpush1.bf16.msra.mxu0 %v1044
        %1229 = vmatprep.subr.bf16.mxu0 %v1043
        %1230 = vmatpush1.bf16.msra.mxu0 %v1042
        %1231 = vmatprep.subr.bf16.mxu0 %v1041
        %1232 = vmatpush1.bf16.msra.mxu0 %v1040
        %1233 = vmatprep.subr.bf16.mxu0 %v1071
        %1234 = vmatpush2.bf16.msra.mxu0 %v1070
        %1235 = vmatprep.subr.bf16.mxu0 %v1069
        %1236 = vmatpush2.bf16.msra.mxu0 %v1068
        %1237 = vmatprep.subr.bf16.mxu0 %v1067
        %1238 = vmatpush2.bf16.msra.mxu0 %v1066
        %1239 = vmatprep.subr.bf16.mxu0 %v1065
        %1240 = vmatpush2.bf16.msra.mxu0 %v1064
        %1241 = vmatprep.subr.bf16.mxu0 %v1063
        %1242 = vmatpush2.bf16.msra.mxu0 %v1062
        %1243 = vmatprep.subr.bf16.mxu0 %v1061
        %1244 = vmatpush2.bf16.msra.mxu0 %v1060
        %1245 = vmatprep.subr.bf16.mxu0 %v1059
        %1246 = vmatpush2.bf16.msra.mxu0 %v1058
        %1247 = vmatprep.subr.bf16.mxu0 %v1057
        %1248 = vmatpush2.bf16.msra.mxu0 %v1056
        %1249 = vmatprep.mubr.bf16.mxu0 %v1210
        %1250 = vmatmul.mubr.bf16.gmra.mxu0 %v1209
        %v1251 = vpop.f32.mrf.mxu0
        %v1252 = vadd.f32 1e-05, %v1251
        %v1253 = vpop.f32.mrf.mxu0
        %v1254 = vadd.f32 1e-05, %v1253
        %v1255 = vpop.f32.mrf.mxu0
        %v1256 = vadd.f32 1e-05, %v1255
        %v1257 = vpop.f32.mrf.mxu0
        %v1258 = vadd.f32 1e-05, %v1257
        %1259 = vmatprep.mubr.bf16.mxu0 %v1212
        %1260 = vmatmul.mubr.bf16.gmra.mxu0 %v1211
        %v1261 = vpop.f32.mrf.mxu0
        %v1262 = vadd.f32 1e-05, %v1261
        %v1263 = vpop.f32.mrf.mxu0
        %v1264 = vadd.f32 1e-05, %v1263
        %v1265 = vpop.f32.mrf.mxu0
        %v1266 = vadd.f32 1e-05, %v1265
        %v1267 = vpop.f32.mrf.mxu0
        %v1268 = vadd.f32 1e-05, %v1267
        %1269 = vmatprep.mubr.bf16.mxu0 %v1214
        %1270 = vmatmul.mubr.bf16.gmra.mxu0 %v1213
        %v1271 = vpop.f32.mrf.mxu0
        %v1272 = vadd.f32 1e-05, %v1271
        %v1273 = vpop.f32.mrf.mxu0
        %v1274 = vadd.f32 1e-05, %v1273
        %v1275 = vpop.f32.mrf.mxu0
        %v1276 = vadd.f32 1e-05, %v1275
        %v1277 = vpop.f32.mrf.mxu0
        %v1278 = vadd.f32 1e-05, %v1277
        %1279 = vmatprep.mubr.bf16.mxu0 %v1216
        %1280 = vmatmul.mubr.bf16.gmra.mxu0 %v1215
        %v1281 = vpop.f32.mrf.mxu0
        %v1282 = vadd.f32 1e-05, %v1281
        %v1283 = vpop.f32.mrf.mxu0
        %v1284 = vadd.f32 1e-05, %v1283
        %v1285 = vpop.f32.mrf.mxu0
        %v1286 = vadd.f32 1e-05, %v1285
        %v1287 = vpop.f32.mrf.mxu0
        %v1288 = vadd.f32 1e-05, %v1287
        %1289 = vdwg.mxu0
        %v1290 = vrsqrt.pop %v1252
        %v1291 = vrsqrt.pop %v1254
        %v1292 = vrsqrt.pop %v1256
        %v1293 = vrsqrt.pop %v1258
        %v1294 = vrsqrt.pop %v1262
        %v1295 = vrsqrt.pop %v1264
        %v1296 = vrsqrt.pop %v1266
        %v1297 = vrsqrt.pop %v1268
        %v1298 = vrsqrt.pop %v1272
        %v1299 = vrsqrt.pop %v1274
        %v1300 = vrsqrt.pop %v1276
        %v1301 = vrsqrt.pop %v1278
        %v1302 = vrsqrt.pop %v1282
        %v1303 = vrsqrt.pop %v1284
        %v1304 = vrsqrt.pop %v1286
        %v1305 = vrsqrt.pop %v1288
        %v1306 = vmul.f32 %v1177, %v1290
        %v1307 = vmul.f32 %v1178, %v1291
        %v1308 = vmul.f32 %v1179, %v1292
        %v1309 = vmul.f32 %v1180, %v1293
        %v1310 = vmul.f32 %v1181, %v1294
        %v1311 = vmul.f32 %v1182, %v1295
        %v1312 = vmul.f32 %v1183, %v1296
        %v1313 = vmul.f32 %v1184, %v1297
        %v1314 = vmul.f32 %v1185, %v1298
        %v1315 = vmul.f32 %v1186, %v1299
        %v1316 = vmul.f32 %v1187, %v1300
        %v1317 = vmul.f32 %v1188, %v1301
        %v1318 = vmul.f32 %v1189, %v1302
        %v1319 = vmul.f32 %v1190, %v1303
        %v1320 = vmul.f32 %v1191, %v1304
        %v1321 = vmul.f32 %v1192, %v1305
        %v1322 = vld [vmem:[%s5] sm:$0x3]
        %v1324 = vlaneseq
        %v1325 = vshrl.u32 %v1324, 7
        %v1326 = vsub.s32 0, %v1325
        %v1327 = vrot.slane %v1322, %v1326
        %v1328 = vlaneseq
        %v1329 = vshrl.u32 %v1328, 7
        %v1330 = vsub.s32 1, %v1329
        %v1331 = vrot.slane %v1322, %v1330
        %v1334 = vmul.f32 %v1306, %v1327
        %v1335 = vmul.f32 %v1307, %v1331
        %v1336 = vmul.f32 %v1308, %v1327
        %v1337 = vmul.f32 %v1309, %v1331
        %v1338 = vmul.f32 %v1310, %v1327
        %v1339 = vmul.f32 %v1311, %v1331
        %v1340 = vmul.f32 %v1312, %v1327
        %v1341 = vmul.f32 %v1313, %v1331
        %v1342 = vmul.f32 %v1314, %v1327
        %v1343 = vmul.f32 %v1315, %v1331
        %v1344 = vmul.f32 %v1316, %v1327
        %v1345 = vmul.f32 %v1317, %v1331
        %v1346 = vmul.f32 %v1318, %v1327
        %v1347 = vmul.f32 %v1319, %v1331
        %v1348 = vmul.f32 %v1320, %v1327
        %v1349 = vmul.f32 %v1321, %v1331
        %v1350 = vld [vmem:[%s6] sm:$0x3]
        %v1352 = vlaneseq
        %v1353 = vshrl.u32 %v1352, 7
        %v1354 = vsub.s32 0, %v1353
        %v1355 = vrot.slane %v1350, %v1354
        %v1356 = vlaneseq
        %v1357 = vshrl.u32 %v1356, 7
        %v1358 = vsub.s32 1, %v1357
        %v1359 = vrot.slane %v1350, %v1358
        %v1362 = vadd.f32 %v1334, %v1355
        %v1363 = vadd.f32 %v1335, %v1359
        %v1364 = vadd.f32 %v1336, %v1355
        %v1365 = vadd.f32 %v1337, %v1359
        %v1366 = vadd.f32 %v1338, %v1355
        %v1367 = vadd.f32 %v1339, %v1359
        %v1368 = vadd.f32 %v1340, %v1355
        %v1369 = vadd.f32 %v1341, %v1359
        %v1370 = vadd.f32 %v1342, %v1355
        %v1371 = vadd.f32 %v1343, %v1359
        %v1372 = vadd.f32 %v1344, %v1355
        %v1373 = vadd.f32 %v1345, %v1359
        %v1374 = vadd.f32 %v1346, %v1355
        %v1375 = vadd.f32 %v1347, %v1359
        %v1376 = vadd.f32 %v1348, %v1355
        %v1377 = vadd.f32 %v1349, %v1359
        %v1378 = vpack.c.bf16 %v1364, %v1362
        %v1379 = vpack.c.bf16 %v1365, %v1363
        %v1380 = vpack.c.bf16 %v1368, %v1366
        %v1381 = vpack.c.bf16 %v1369, %v1367
        %v1382 = vpack.c.bf16 %v1372, %v1370
        %v1383 = vpack.c.bf16 %v1373, %v1371
        %v1384 = vpack.c.bf16 %v1376, %v1374
        %v1385 = vpack.c.bf16 %v1377, %v1375
        %v1386 = vld [vmem:[#allocation7] sm:$0xff]
        %v1387 = vld [vmem:[#allocation7 + $0x8] sm:$0xff]
        %v1388 = vld [vmem:[#allocation7 + $0x10] sm:$0xff]
        %v1389 = vld [vmem:[#allocation7 + $0x18] sm:$0xff]
        %v1390 = vld [vmem:[#allocation7 + $0x20] sm:$0xff]
        %v1391 = vld [vmem:[#allocation7 + $0x28] sm:$0xff]
        %v1392 = vld [vmem:[#allocation7 + $0x30] sm:$0xff]
        %v1393 = vld [vmem:[#allocation7 + $0x38] sm:$0xff]
        %v1394 = vld [vmem:[#allocation7 + $0x40] sm:$0xff]
        %v1395 = vld [vmem:[#allocation7 + $0x48] sm:$0xff]
        %v1396 = vld [vmem:[#allocation7 + $0x50] sm:$0xff]
        %v1397 = vld [vmem:[#allocation7 + $0x58] sm:$0xff]
        %v1398 = vld [vmem:[#allocation7 + $0x60] sm:$0xff]
        %v1399 = vld [vmem:[#allocation7 + $0x68] sm:$0xff]
        %v1400 = vld [vmem:[#allocation7 + $0x70] sm:$0xff]
        %v1401 = vld [vmem:[#allocation7 + $0x78] sm:$0xff]
        %v1402 = vld [vmem:[#allocation7 + $0x80] sm:$0xff]
        %v1403 = vld [vmem:[#allocation7 + $0x88] sm:$0xff]
        %v1404 = vld [vmem:[#allocation7 + $0x90] sm:$0xff]
        %v1405 = vld [vmem:[#allocation7 + $0x98] sm:$0xff]
        %v1406 = vld [vmem:[#allocation7 + $0xa0] sm:$0xff]
        %v1407 = vld [vmem:[#allocation7 + $0xa8] sm:$0xff]
        %v1408 = vld [vmem:[#allocation7 + $0xb0] sm:$0xff]
        %v1409 = vld [vmem:[#allocation7 + $0xb8] sm:$0xff]
        %v1410 = vld [vmem:[#allocation7 + $0xc0] sm:$0xff]
        %v1411 = vld [vmem:[#allocation7 + $0xc8] sm:$0xff]
        %v1412 = vld [vmem:[#allocation7 + $0xd0] sm:$0xff]
        %v1413 = vld [vmem:[#allocation7 + $0xd8] sm:$0xff]
        %v1414 = vld [vmem:[#allocation7 + $0xe0] sm:$0xff]
        %v1415 = vld [vmem:[#allocation7 + $0xe8] sm:$0xff]
        %v1416 = vld [vmem:[#allocation7 + $0xf0] sm:$0xff]
        %v1417 = vld [vmem:[#allocation7 + $0xf8] sm:$0xff]
        %v1418 = vld [vmem:[%s8] sm:$0x3]
        %v1420 = vlaneseq
        %v1421 = vshrl.u32 %v1420, 7
        %v1422 = vsub.s32 0, %v1421
        %v1423 = vrot.slane %v1418, %v1422
        %v1424 = vlaneseq
        %v1425 = vshrl.u32 %v1424, 7
        %v1426 = vsub.s32 1, %v1425
        %v1427 = vrot.slane %v1418, %v1426
        %v1462 = vunpack.c.l.b16 %v1386
        %v1463 = vunpack.c.h.b16 %v1386
        %v1464 = vunpack.c.l.b16 %v1387
        %v1465 = vunpack.c.h.b16 %v1387
        %v1466 = vunpack.c.l.b16 %v1388
        %v1467 = vunpack.c.h.b16 %v1388
        %v1468 = vunpack.c.l.b16 %v1389
        %v1469 = vunpack.c.h.b16 %v1389
        %v1470 = vunpack.c.l.b16 %v1390
        %v1471 = vunpack.c.h.b16 %v1390
        %v1472 = vunpack.c.l.b16 %v1391
        %v1473 = vunpack.c.h.b16 %v1391
        %v1474 = vunpack.c.l.b16 %v1392
        %v1475 = vunpack.c.h.b16 %v1392
        %v1476 = vunpack.c.l.b16 %v1393
        %v1477 = vunpack.c.h.b16 %v1393
        %v1478 = vunpack.c.l.b16 %v1394
        %v1479 = vunpack.c.h.b16 %v1394
        %v1480 = vunpack.c.l.b16 %v1395
        %v1481 = vunpack.c.h.b16 %v1395
        %v1482 = vunpack.c.l.b16 %v1396
        %v1483 = vunpack.c.h.b16 %v1396
        %v1484 = vunpack.c.l.b16 %v1397
        %v1485 = vunpack.c.h.b16 %v1397
        %v1486 = vunpack.c.l.b16 %v1398
        %v1487 = vunpack.c.h.b16 %v1398
        %v1488 = vunpack.c.l.b16 %v1399
        %v1489 = vunpack.c.h.b16 %v1399
        %v1490 = vunpack.c.l.b16 %v1400
        %v1491 = vunpack.c.h.b16 %v1400
        %v1492 = vunpack.c.l.b16 %v1401
        %v1493 = vunpack.c.h.b16 %v1401
        %v1494 = vunpack.c.l.b16 %v1402
        %v1495 = vunpack.c.h.b16 %v1402
        %v1496 = vunpack.c.l.b16 %v1403
        %v1497 = vunpack.c.h.b16 %v1403
        %v1498 = vunpack.c.l.b16 %v1404
        %v1499 = vunpack.c.h.b16 %v1404
        %v1500 = vunpack.c.l.b16 %v1405
        %v1501 = vunpack.c.h.b16 %v1405
        %v1502 = vunpack.c.l.b16 %v1406
        %v1503 = vunpack.c.h.b16 %v1406
        %v1504 = vunpack.c.l.b16 %v1407
        %v1505 = vunpack.c.h.b16 %v1407
        %v1506 = vunpack.c.l.b16 %v1408
        %v1507 = vunpack.c.h.b16 %v1408
        %v1508 = vunpack.c.l.b16 %v1409
        %v1509 = vunpack.c.h.b16 %v1409
        %v1510 = vunpack.c.l.b16 %v1410
        %v1511 = vunpack.c.h.b16 %v1410
        %v1512 = vunpack.c.l.b16 %v1411
        %v1513 = vunpack.c.h.b16 %v1411
        %v1514 = vunpack.c.l.b16 %v1412
        %v1515 = vunpack.c.h.b16 %v1412
        %v1516 = vunpack.c.l.b16 %v1413
        %v1517 = vunpack.c.h.b16 %v1413
        %v1518 = vunpack.c.l.b16 %v1414
        %v1519 = vunpack.c.h.b16 %v1414
        %v1520 = vunpack.c.l.b16 %v1415
        %v1521 = vunpack.c.h.b16 %v1415
        %v1522 = vunpack.c.l.b16 %v1416
        %v1523 = vunpack.c.h.b16 %v1416
        %v1524 = vunpack.c.l.b16 %v1417
        %v1525 = vunpack.c.h.b16 %v1417
        %v1526 = vpack.c.b16 %v1464, %v1462
        %v1527 = vpack.c.b16 %v1465, %v1463
        %v1528 = vpack.c.b16 %v1468, %v1466
        %v1529 = vpack.c.b16 %v1469, %v1467
        %v1530 = vpack.c.b16 %v1472, %v1470
        %v1531 = vpack.c.b16 %v1473, %v1471
        %v1532 = vpack.c.b16 %v1476, %v1474
        %v1533 = vpack.c.b16 %v1477, %v1475
        %v1534 = vpack.c.b16 %v1480, %v1478
        %v1535 = vpack.c.b16 %v1481, %v1479
        %v1536 = vpack.c.b16 %v1484, %v1482
        %v1537 = vpack.c.b16 %v1485, %v1483
        %v1538 = vpack.c.b16 %v1488, %v1486
        %v1539 = vpack.c.b16 %v1489, %v1487
        %v1540 = vpack.c.b16 %v1492, %v1490
        %v1541 = vpack.c.b16 %v1493, %v1491
        %v1542 = vpack.c.b16 %v1496, %v1494
        %v1543 = vpack.c.b16 %v1497, %v1495
        %v1544 = vpack.c.b16 %v1500, %v1498
        %v1545 = vpack.c.b16 %v1501, %v1499
        %v1546 = vpack.c.b16 %v1504, %v1502
        %v1547 = vpack.c.b16 %v1505, %v1503
        %v1548 = vpack.c.b16 %v1508, %v1506
        %v1549 = vpack.c.b16 %v1509, %v1507
        %v1550 = vpack.c.b16 %v1512, %v1510
        %v1551 = vpack.c.b16 %v1513, %v1511
        %v1552 = vpack.c.b16 %v1516, %v1514
        %v1553 = vpack.c.b16 %v1517, %v1515
        %v1554 = vpack.c.b16 %v1520, %v1518
        %v1555 = vpack.c.b16 %v1521, %v1519
        %v1556 = vpack.c.b16 %v1524, %v1522
        %v1557 = vpack.c.b16 %v1525, %v1523
        %1590 = vmatprep.subr.bf16.mxu0 %v1541
        %1591 = vmatpush1.bf16.msra.mxu0 %v1540
        %1592 = vmatprep.subr.bf16.mxu0 %v1539
        %1593 = vmatpush1.bf16.msra.mxu0 %v1538
        %1594 = vmatprep.subr.bf16.mxu0 %v1537
        %1595 = vmatpush1.bf16.msra.mxu0 %v1536
        %1596 = vmatprep.subr.bf16.mxu0 %v1535
        %1597 = vmatpush1.bf16.msra.mxu0 %v1534
        %1598 = vmatprep.subr.bf16.mxu0 %v1533
        %1599 = vmatpush1.bf16.msra.mxu0 %v1532
        %1600 = vmatprep.subr.bf16.mxu0 %v1531
        %1601 = vmatpush1.bf16.msra.mxu0 %v1530
        %1602 = vmatprep.subr.bf16.mxu0 %v1529
        %1603 = vmatpush1.bf16.msra.mxu0 %v1528
        %1604 = vmatprep.subr.bf16.mxu0 %v1527
        %1605 = vmatpush1.bf16.msra.mxu0 %v1526
        %1606 = vmatprep.subr.bf16.mxu0 %v1557
        %1607 = vmatpush2.bf16.msra.mxu0 %v1556
        %1608 = vmatprep.subr.bf16.mxu0 %v1555
        %1609 = vmatpush2.bf16.msra.mxu0 %v1554
        %1610 = vmatprep.subr.bf16.mxu0 %v1553
        %1611 = vmatpush2.bf16.msra.mxu0 %v1552
        %1612 = vmatprep.subr.bf16.mxu0 %v1551
        %1613 = vmatpush2.bf16.msra.mxu0 %v1550
        %1614 = vmatprep.subr.bf16.mxu0 %v1549
        %1615 = vmatpush2.bf16.msra.mxu0 %v1548
        %1616 = vmatprep.subr.bf16.mxu0 %v1547
        %1617 = vmatpush2.bf16.msra.mxu0 %v1546
        %1618 = vmatprep.subr.bf16.mxu0 %v1545
        %1619 = vmatpush2.bf16.msra.mxu0 %v1544
        %1620 = vmatprep.subr.bf16.mxu0 %v1543
        %1621 = vmatpush2.bf16.msra.mxu0 %v1542
        %1622 = vmatprep.mubr.bf16.mxu0 %v1379
        %1623 = vmatmul.mubr.bf16.gmra.mxu0 %v1378
        %v1624 = vpop.f32.mrf.mxu0
        %v1625 = vadd.f32 %v1423, %v1624
        %v1626 = vpop.f32.mrf.mxu0
        %v1627 = vadd.f32 %v1427, %v1626
        %v1628 = vpop.f32.mrf.mxu0
        %v1629 = vadd.f32 %v1423, %v1628
        %v1630 = vpop.f32.mrf.mxu0
        %v1631 = vadd.f32 %v1427, %v1630
        %1632 = vmatprep.mubr.bf16.mxu0 %v1381
        %1633 = vmatmul.mubr.bf16.gmra.mxu0 %v1380
        %v1634 = vpop.f32.mrf.mxu0
        %v1635 = vadd.f32 %v1423, %v1634
        %v1636 = vpop.f32.mrf.mxu0
        %v1637 = vadd.f32 %v1427, %v1636
        %v1638 = vpop.f32.mrf.mxu0
        %v1639 = vadd.f32 %v1423, %v1638
        %v1640 = vpop.f32.mrf.mxu0
        %v1641 = vadd.f32 %v1427, %v1640
        %1642 = vmatprep.mubr.bf16.mxu0 %v1383
        %1643 = vmatmul.mubr.bf16.gmra.mxu0 %v1382
        %v1644 = vpop.f32.mrf.mxu0
        %v1645 = vadd.f32 %v1423, %v1644
        %v1646 = vpop.f32.mrf.mxu0
        %v1647 = vadd.f32 %v1427, %v1646
        %v1648 = vpop.f32.mrf.mxu0
        %v1649 = vadd.f32 %v1423, %v1648
        %v1650 = vpop.f32.mrf.mxu0
        %v1651 = vadd.f32 %v1427, %v1650
        %1652 = vmatprep.mubr.bf16.mxu0 %v1385
        %1653 = vmatmul.mubr.bf16.gmra.mxu0 %v1384
        %v1654 = vpop.f32.mrf.mxu0
        %v1655 = vadd.f32 %v1423, %v1654
        %v1656 = vpop.f32.mrf.mxu0
        %v1657 = vadd.f32 %v1427, %v1656
        %v1658 = vpop.f32.mrf.mxu0
        %v1659 = vadd.f32 %v1423, %v1658
        %v1660 = vpop.f32.mrf.mxu0
        %v1661 = vadd.f32 %v1427, %v1660
        %1662 = vdwg.mxu0
        %v1663 = vmul.f32 %v1625, %v1625
        %v1664 = vmul.f32 %v1627, %v1627
        %v1665 = vmul.f32 %v1629, %v1629
        %v1666 = vmul.f32 %v1631, %v1631
        %v1667 = vmul.f32 %v1635, %v1635
        %v1668 = vmul.f32 %v1637, %v1637
        %v1669 = vmul.f32 %v1639, %v1639
        %v1670 = vmul.f32 %v1641, %v1641
        %v1671 = vmul.f32 %v1645, %v1645
        %v1672 = vmul.f32 %v1647, %v1647
        %v1673 = vmul.f32 %v1649, %v1649
        %v1674 = vmul.f32 %v1651, %v1651
        %v1675 = vmul.f32 %v1655, %v1655
        %v1676 = vmul.f32 %v1657, %v1657
        %v1677 = vmul.f32 %v1659, %v1659
        %v1678 = vmul.f32 %v1661, %v1661
        %v1679 = vmul.f32 %v1625, %v1663
        %v1680 = vmul.f32 %v1627, %v1664
        %v1681 = vmul.f32 %v1629, %v1665
        %v1682 = vmul.f32 %v1631, %v1666
        %v1683 = vmul.f32 %v1635, %v1667
        %v1684 = vmul.f32 %v1637, %v1668
        %v1685 = vmul.f32 %v1639, %v1669
        %v1686 = vmul.f32 %v1641, %v1670
        %v1687 = vmul.f32 %v1645, %v1671
        %v1688 = vmul.f32 %v1647, %v1672
        %v1689 = vmul.f32 %v1649, %v1673
        %v1690 = vmul.f32 %v1651, %v1674
        %v1691 = vmul.f32 %v1655, %v1675
        %v1692 = vmul.f32 %v1657, %v1676
        %v1693 = vmul.f32 %v1659, %v1677
        %v1694 = vmul.f32 %v1661, %v1678
        %v1695 = vmul.f32 %v1679, 0.044715
        %v1696 = vmul.f32 %v1680, 0.044715
        %v1697 = vmul.f32 %v1681, 0.044715
        %v1698 = vmul.f32 %v1682, 0.044715
        %v1699 = vmul.f32 %v1683, 0.044715
        %v1700 = vmul.f32 %v1684, 0.044715
        %v1701 = vmul.f32 %v1685, 0.044715
        %v1702 = vmul.f32 %v1686, 0.044715
        %v1703 = vmul.f32 %v1687, 0.044715
        %v1704 = vmul.f32 %v1688, 0.044715
        %v1705 = vmul.f32 %v1689, 0.044715
        %v1706 = vmul.f32 %v1690, 0.044715
        %v1707 = vmul.f32 %v1691, 0.044715
        %v1708 = vmul.f32 %v1692, 0.044715
        %v1709 = vmul.f32 %v1693, 0.044715
        %v1710 = vmul.f32 %v1694, 0.044715
        %v1711 = vadd.f32 %v1625, %v1695
        %v1712 = vadd.f32 %v1627, %v1696
        %v1713 = vadd.f32 %v1629, %v1697
        %v1714 = vadd.f32 %v1631, %v1698
        %v1715 = vadd.f32 %v1635, %v1699
        %v1716 = vadd.f32 %v1637, %v1700
        %v1717 = vadd.f32 %v1639, %v1701
        %v1718 = vadd.f32 %v1641, %v1702
        %v1719 = vadd.f32 %v1645, %v1703
        %v1720 = vadd.f32 %v1647, %v1704
        %v1721 = vadd.f32 %v1649, %v1705
        %v1722 = vadd.f32 %v1651, %v1706
        %v1723 = vadd.f32 %v1655, %v1707
        %v1724 = vadd.f32 %v1657, %v1708
        %v1725 = vadd.f32 %v1659, %v1709
        %v1726 = vadd.f32 %v1661, %v1710
        %v1727 = vmul.f32 %v1711, 0.7978846
        %v1728 = vmul.f32 %v1712, 0.7978846
        %v1729 = vmul.f32 %v1713, 0.7978846
        %v1730 = vmul.f32 %v1714, 0.7978846
        %v1731 = vmul.f32 %v1715, 0.7978846
        %v1732 = vmul.f32 %v1716, 0.7978846
        %v1733 = vmul.f32 %v1717, 0.7978846
        %v1734 = vmul.f32 %v1718, 0.7978846
        %v1735 = vmul.f32 %v1719, 0.7978846
        %v1736 = vmul.f32 %v1720, 0.7978846
        %v1737 = vmul.f32 %v1721, 0.7978846
        %v1738 = vmul.f32 %v1722, 0.7978846
        %v1739 = vmul.f32 %v1723, 0.7978846
        %v1740 = vmul.f32 %v1724, 0.7978846
        %v1741 = vmul.f32 %v1725, 0.7978846
        %v1742 = vmul.f32 %v1726, 0.7978846
        %v1743 = vtanh.pop %v1727
        %v1744 = vtanh.pop %v1728
        %v1745 = vtanh.pop %v1729
        %v1746 = vtanh.pop %v1730
        %v1747 = vtanh.pop %v1731
        %v1748 = vtanh.pop %v1732
        %v1749 = vtanh.pop %v1733
        %v1750 = vtanh.pop %v1734
        %v1751 = vtanh.pop %v1735
        %v1752 = vtanh.pop %v1736
        %v1753 = vtanh.pop %v1737
        %v1754 = vtanh.pop %v1738
        %v1755 = vtanh.pop %v1739
        %v1756 = vtanh.pop %v1740
        %v1757 = vtanh.pop %v1741
        %v1758 = vtanh.pop %v1742
        %v1759 = vadd.f32 %v1743, 1.0
        %v1760 = vadd.f32 %v1744, 1.0
        %v1761 = vadd.f32 %v1745, 1.0
        %v1762 = vadd.f32 %v1746, 1.0
        %v1763 = vadd.f32 %v1747, 1.0
        %v1764 = vadd.f32 %v1748, 1.0
        %v1765 = vadd.f32 %v1749, 1.0
        %v1766 = vadd.f32 %v1750, 1.0
        %v1767 = vadd.f32 %v1751, 1.0
        %v1768 = vadd.f32 %v1752, 1.0
        %v1769 = vadd.f32 %v1753, 1.0
        %v1770 = vadd.f32 %v1754, 1.0
        %v1771 = vadd.f32 %v1755, 1.0
        %v1772 = vadd.f32 %v1756, 1.0
        %v1773 = vadd.f32 %v1757, 1.0
        %v1774 = vadd.f32 %v1758, 1.0
        %v1775 = vmul.f32 %v1759, 0.5
        %v1776 = vmul.f32 %v1760, 0.5
        %v1777 = vmul.f32 %v1761, 0.5
        %v1778 = vmul.f32 %v1762, 0.5
        %v1779 = vmul.f32 %v1763, 0.5
        %v1780 = vmul.f32 %v1764, 0.5
        %v1781 = vmul.f32 %v1765, 0.5
        %v1782 = vmul.f32 %v1766, 0.5
        %v1783 = vmul.f32 %v1767, 0.5
        %v1784 = vmul.f32 %v1768, 0.5
        %v1785 = vmul.f32 %v1769, 0.5
        %v1786 = vmul.f32 %v1770, 0.5
        %v1787 = vmul.f32 %v1771, 0.5
        %v1788 = vmul.f32 %v1772, 0.5
        %v1789 = vmul.f32 %v1773, 0.5
        %v1790 = vmul.f32 %v1774, 0.5
        %v1791 = vmul.f32 %v1625, %v1775
        %v1792 = vmul.f32 %v1627, %v1776
        %v1793 = vmul.f32 %v1629, %v1777
        %v1794 = vmul.f32 %v1631, %v1778
        %v1795 = vmul.f32 %v1635, %v1779
        %v1796 = vmul.f32 %v1637, %v1780
        %v1797 = vmul.f32 %v1639, %v1781
        %v1798 = vmul.f32 %v1641, %v1782
        %v1799 = vmul.f32 %v1645, %v1783
        %v1800 = vmul.f32 %v1647, %v1784
        %v1801 = vmul.f32 %v1649, %v1785
        %v1802 = vmul.f32 %v1651, %v1786
        %v1803 = vmul.f32 %v1655, %v1787
        %v1804 = vmul.f32 %v1657, %v1788
        %v1805 = vmul.f32 %v1659, %v1789
        %v1806 = vmul.f32 %v1661, %v1790
        %v1807 = vpack.c.bf16 %v1793, %v1791
        %v1808 = vpack.c.bf16 %v1794, %v1792
        %v1809 = vpack.c.bf16 %v1797, %v1795
        %v1810 = vpack.c.bf16 %v1798, %v1796
        %v1811 = vpack.c.bf16 %v1801, %v1799
        %v1812 = vpack.c.bf16 %v1802, %v1800
        %v1813 = vpack.c.bf16 %v1805, %v1803
        %v1814 = vpack.c.bf16 %v1806, %v1804
        %v1815 = vld [vmem:[#allocation8] sm:$0xff]
        %v1816 = vld [vmem:[#allocation8 + $0x8] sm:$0xff]
        %v1817 = vld [vmem:[#allocation8 + $0x10] sm:$0xff]
        %v1818 = vld [vmem:[#allocation8 + $0x18] sm:$0xff]
        %v1819 = vld [vmem:[#allocation8 + $0x20] sm:$0xff]
        %v1820 = vld [vmem:[#allocation8 + $0x28] sm:$0xff]
        %v1821 = vld [vmem:[#allocation8 + $0x30] sm:$0xff]
        %v1822 = vld [vmem:[#allocation8 + $0x38] sm:$0xff]
        %v1823 = vld [vmem:[#allocation8 + $0x40] sm:$0xff]
        %v1824 = vld [vmem:[#allocation8 + $0x48] sm:$0xff]
        %v1825 = vld [vmem:[#allocation8 + $0x50] sm:$0xff]
        %v1826 = vld [vmem:[#allocation8 + $0x58] sm:$0xff]
        %v1827 = vld [vmem:[#allocation8 + $0x60] sm:$0xff]
        %v1828 = vld [vmem:[#allocation8 + $0x68] sm:$0xff]
        %v1829 = vld [vmem:[#allocation8 + $0x70] sm:$0xff]
        %v1830 = vld [vmem:[#allocation8 + $0x78] sm:$0xff]
        %v1831 = vld [vmem:[#allocation8 + $0x80] sm:$0xff]
        %v1832 = vld [vmem:[#allocation8 + $0x88] sm:$0xff]
        %v1833 = vld [vmem:[#allocation8 + $0x90] sm:$0xff]
        %v1834 = vld [vmem:[#allocation8 + $0x98] sm:$0xff]
        %v1835 = vld [vmem:[#allocation8 + $0xa0] sm:$0xff]
        %v1836 = vld [vmem:[#allocation8 + $0xa8] sm:$0xff]
        %v1837 = vld [vmem:[#allocation8 + $0xb0] sm:$0xff]
        %v1838 = vld [vmem:[#allocation8 + $0xb8] sm:$0xff]
        %v1839 = vld [vmem:[#allocation8 + $0xc0] sm:$0xff]
        %v1840 = vld [vmem:[#allocation8 + $0xc8] sm:$0xff]
        %v1841 = vld [vmem:[#allocation8 + $0xd0] sm:$0xff]
        %v1842 = vld [vmem:[#allocation8 + $0xd8] sm:$0xff]
        %v1843 = vld [vmem:[#allocation8 + $0xe0] sm:$0xff]
        %v1844 = vld [vmem:[#allocation8 + $0xe8] sm:$0xff]
        %v1845 = vld [vmem:[#allocation8 + $0xf0] sm:$0xff]
        %v1846 = vld [vmem:[#allocation8 + $0xf8] sm:$0xff]
        %v1847 = vld [vmem:[%s10] sm:$0x3]
        %v1849 = vlaneseq
        %v1850 = vshrl.u32 %v1849, 7
        %v1851 = vsub.s32 0, %v1850
        %v1852 = vrot.slane %v1847, %v1851
        %v1853 = vlaneseq
        %v1854 = vshrl.u32 %v1853, 7
        %v1855 = vsub.s32 1, %v1854
        %v1856 = vrot.slane %v1847, %v1855
        %v1891 = vunpack.c.l.b16 %v1815
        %v1892 = vunpack.c.h.b16 %v1815
        %v1893 = vunpack.c.l.b16 %v1816
        %v1894 = vunpack.c.h.b16 %v1816
        %v1895 = vunpack.c.l.b16 %v1817
        %v1896 = vunpack.c.h.b16 %v1817
        %v1897 = vunpack.c.l.b16 %v1818
        %v1898 = vunpack.c.h.b16 %v1818
        %v1899 = vunpack.c.l.b16 %v1819
        %v1900 = vunpack.c.h.b16 %v1819
        %v1901 = vunpack.c.l.b16 %v1820
        %v1902 = vunpack.c.h.b16 %v1820
        %v1903 = vunpack.c.l.b16 %v1821
        %v1904 = vunpack.c.h.b16 %v1821
        %v1905 = vunpack.c.l.b16 %v1822
        %v1906 = vunpack.c.h.b16 %v1822
        %v1907 = vunpack.c.l.b16 %v1823
        %v1908 = vunpack.c.h.b16 %v1823
        %v1909 = vunpack.c.l.b16 %v1824
        %v1910 = vunpack.c.h.b16 %v1824
        %v1911 = vunpack.c.l.b16 %v1825
        %v1912 = vunpack.c.h.b16 %v1825
        %v1913 = vunpack.c.l.b16 %v1826
        %v1914 = vunpack.c.h.b16 %v1826
        %v1915 = vunpack.c.l.b16 %v1827
        %v1916 = vunpack.c.h.b16 %v1827
        %v1917 = vunpack.c.l.b16 %v1828
        %v1918 = vunpack.c.h.b16 %v1828
        %v1919 = vunpack.c.l.b16 %v1829
        %v1920 = vunpack.c.h.b16 %v1829
        %v1921 = vunpack.c.l.b16 %v1830
        %v1922 = vunpack.c.h.b16 %v1830
        %v1923 = vunpack.c.l.b16 %v1831
        %v1924 = vunpack.c.h.b16 %v1831
        %v1925 = vunpack.c.l.b16 %v1832
        %v1926 = vunpack.c.h.b16 %v1832
        %v1927 = vunpack.c.l.b16 %v1833
        %v1928 = vunpack.c.h.b16 %v1833
        %v1929 = vunpack.c.l.b16 %v1834
        %v1930 = vunpack.c.h.b16 %v1834
        %v1931 = vunpack.c.l.b16 %v1835
        %v1932 = vunpack.c.h.b16 %v1835
        %v1933 = vunpack.c.l.b16 %v1836
        %v1934 = vunpack.c.h.b16 %v1836
        %v1935 = vunpack.c.l.b16 %v1837
        %v1936 = vunpack.c.h.b16 %v1837
        %v1937 = vunpack.c.l.b16 %v1838
        %v1938 = vunpack.c.h.b16 %v1838
        %v1939 = vunpack.c.l.b16 %v1839
        %v1940 = vunpack.c.h.b16 %v1839
        %v1941 = vunpack.c.l.b16 %v1840
        %v1942 = vunpack.c.h.b16 %v1840
        %v1943 = vunpack.c.l.b16 %v1841
        %v1944 = vunpack.c.h.b16 %v1841
        %v1945 = vunpack.c.l.b16 %v1842
        %v1946 = vunpack.c.h.b16 %v1842
        %v1947 = vunpack.c.l.b16 %v1843
        %v1948 = vunpack.c.h.b16 %v1843
        %v1949 = vunpack.c.l.b16 %v1844
        %v1950 = vunpack.c.h.b16 %v1844
        %v1951 = vunpack.c.l.b16 %v1845
        %v1952 = vunpack.c.h.b16 %v1845
        %v1953 = vunpack.c.l.b16 %v1846
        %v1954 = vunpack.c.h.b16 %v1846
        %v1955 = vpack.c.b16 %v1893, %v1891
        %v1956 = vpack.c.b16 %v1894, %v1892
        %v1957 = vpack.c.b16 %v1897, %v1895
        %v1958 = vpack.c.b16 %v1898, %v1896
        %v1959 = vpack.c.b16 %v1901, %v1899
        %v1960 = vpack.c.b16 %v1902, %v1900
        %v1961 = vpack.c.b16 %v1905, %v1903
        %v1962 = vpack.c.b16 %v1906, %v1904
        %v1963 = vpack.c.b16 %v1909, %v1907
        %v1964 = vpack.c.b16 %v1910, %v1908
        %v1965 = vpack.c.b16 %v1913, %v1911
        %v1966 = vpack.c.b16 %v1914, %v1912
        %v1967 = vpack.c.b16 %v1917, %v1915
        %v1968 = vpack.c.b16 %v1918, %v1916
        %v1969 = vpack.c.b16 %v1921, %v1919
        %v1970 = vpack.c.b16 %v1922, %v1920
        %v1971 = vpack.c.b16 %v1925, %v1923
        %v1972 = vpack.c.b16 %v1926, %v1924
        %v1973 = vpack.c.b16 %v1929, %v1927
        %v1974 = vpack.c.b16 %v1930, %v1928
        %v1975 = vpack.c.b16 %v1933, %v1931
        %v1976 = vpack.c.b16 %v1934, %v1932
        %v1977 = vpack.c.b16 %v1937, %v1935
        %v1978 = vpack.c.b16 %v1938, %v1936
        %v1979 = vpack.c.b16 %v1941, %v1939
        %v1980 = vpack.c.b16 %v1942, %v1940
        %v1981 = vpack.c.b16 %v1945, %v1943
        %v1982 = vpack.c.b16 %v1946, %v1944
        %v1983 = vpack.c.b16 %v1949, %v1947
        %v1984 = vpack.c.b16 %v1950, %v1948
        %v1985 = vpack.c.b16 %v1953, %v1951
        %v1986 = vpack.c.b16 %v1954, %v1952
        %2019 = vmatprep.subr.bf16.mxu0 %v1970
        %2020 = vmatpush1.bf16.msra.mxu0 %v1969
        %2021 = vmatprep.subr.bf16.mxu0 %v1968
        %2022 = vmatpush1.bf16.msra.mxu0 %v1967
        %2023 = vmatprep.subr.bf16.mxu0 %v1966
        %2024 = vmatpush1.bf16.msra.mxu0 %v1965
        %2025 = vmatprep.subr.bf16.mxu0 %v1964
        %2026 = vmatpush1.bf16.msra.mxu0 %v1963
        %2027 = vmatprep.subr.bf16.mxu0 %v1962
        %2028 = vmatpush1.bf16.msra.mxu0 %v1961
        %2029 = vmatprep.subr.bf16.mxu0 %v1960
        %2030 = vmatpush1.bf16.msra.mxu0 %v1959
        %2031 = vmatprep.subr.bf16.mxu0 %v1958
        %2032 = vmatpush1.bf16.msra.mxu0 %v1957
        %2033 = vmatprep.subr.bf16.mxu0 %v1956
        %2034 = vmatpush1.bf16.msra.mxu0 %v1955
        %2035 = vmatprep.subr.bf16.mxu0 %v1986
        %2036 = vmatpush2.bf16.msra.mxu0 %v1985
        %2037 = vmatprep.subr.bf16.mxu0 %v1984
        %2038 = vmatpush2.bf16.msra.mxu0 %v1983
        %2039 = vmatprep.subr.bf16.mxu0 %v1982
        %2040 = vmatpush2.bf16.msra.mxu0 %v1981
        %2041 = vmatprep.subr.bf16.mxu0 %v1980
        %2042 = vmatpush2.bf16.msra.mxu0 %v1979
        %2043 = vmatprep.subr.bf16.mxu0 %v1978
        %2044 = vmatpush2.bf16.msra.mxu0 %v1977
        %2045 = vmatprep.subr.bf16.mxu0 %v1976
        %2046 = vmatpush2.bf16.msra.mxu0 %v1975
        %2047 = vmatprep.subr.bf16.mxu0 %v1974
        %2048 = vmatpush2.bf16.msra.mxu0 %v1973
        %2049 = vmatprep.subr.bf16.mxu0 %v1972
        %2050 = vmatpush2.bf16.msra.mxu0 %v1971
        %2051 = vmatprep.mubr.bf16.mxu0 %v1808
        %2052 = vmatmul.mubr.bf16.gmra.mxu0 %v1807
        %v2053 = vpop.f32.mrf.mxu0
        %v2054 = vadd.f32 %v1852, %v2053
        %v2055 = vpop.f32.mrf.mxu0
        %v2056 = vadd.f32 %v1856, %v2055
        %v2057 = vpop.f32.mrf.mxu0
        %v2058 = vadd.f32 %v1852, %v2057
        %v2059 = vpop.f32.mrf.mxu0
        %v2060 = vadd.f32 %v1856, %v2059
        %2061 = vmatprep.mubr.bf16.mxu0 %v1810
        %2062 = vmatmul.mubr.bf16.gmra.mxu0 %v1809
        %v2063 = vpop.f32.mrf.mxu0
        %v2064 = vadd.f32 %v1852, %v2063
        %v2065 = vpop.f32.mrf.mxu0
        %v2066 = vadd.f32 %v1856, %v2065
        %v2067 = vpop.f32.mrf.mxu0
        %v2068 = vadd.f32 %v1852, %v2067
        %v2069 = vpop.f32.mrf.mxu0
        %v2070 = vadd.f32 %v1856, %v2069
        %2071 = vmatprep.mubr.bf16.mxu0 %v1812
        %2072 = vmatmul.mubr.bf16.gmra.mxu0 %v1811
        %v2073 = vpop.f32.mrf.mxu0
        %v2074 = vadd.f32 %v1852, %v2073
        %v2075 = vpop.f32.mrf.mxu0
        %v2076 = vadd.f32 %v1856, %v2075
        %v2077 = vpop.f32.mrf.mxu0
        %v2078 = vadd.f32 %v1852, %v2077
        %v2079 = vpop.f32.mrf.mxu0
        %v2080 = vadd.f32 %v1856, %v2079
        %2081 = vmatprep.mubr.bf16.mxu0 %v1814
        %2082 = vmatmul.mubr.bf16.gmra.mxu0 %v1813
        %v2083 = vpop.f32.mrf.mxu0
        %v2084 = vadd.f32 %v1852, %v2083
        %v2085 = vpop.f32.mrf.mxu0
        %v2086 = vadd.f32 %v1856, %v2085
        %v2087 = vpop.f32.mrf.mxu0
        %v2088 = vadd.f32 %v1852, %v2087
        %v2089 = vpop.f32.mrf.mxu0
        %v2090 = vadd.f32 %v1856, %v2089
        %2091 = vdwg.mxu0
        %v2092 = vmul.f32 %v1791, %v2054
        %v2093 = vmul.f32 %v1792, %v2056
        %v2094 = vmul.f32 %v1793, %v2058
        %v2095 = vmul.f32 %v1794, %v2060
        %v2096 = vmul.f32 %v1795, %v2064
        %v2097 = vmul.f32 %v1796, %v2066
        %v2098 = vmul.f32 %v1797, %v2068
        %v2099 = vmul.f32 %v1798, %v2070
        %v2100 = vmul.f32 %v1799, %v2074
        %v2101 = vmul.f32 %v1800, %v2076
        %v2102 = vmul.f32 %v1801, %v2078
        %v2103 = vmul.f32 %v1802, %v2080
        %v2104 = vmul.f32 %v1803, %v2084
        %v2105 = vmul.f32 %v1804, %v2086
        %v2106 = vmul.f32 %v1805, %v2088
        %v2107 = vmul.f32 %v1806, %v2090
        %v2108 = vpack.c.bf16 %v2094, %v2092
        %v2109 = vpack.c.bf16 %v2095, %v2093
        %v2110 = vpack.c.bf16 %v2098, %v2096
        %v2111 = vpack.c.bf16 %v2099, %v2097
        %v2112 = vpack.c.bf16 %v2102, %v2100
        %v2113 = vpack.c.bf16 %v2103, %v2101
        %v2114 = vpack.c.bf16 %v2106, %v2104
        %v2115 = vpack.c.bf16 %v2107, %v2105
        %v2116 = vld [vmem:[#allocation10] sm:$0xff]
        %v2117 = vld [vmem:[#allocation10 + $0x8] sm:$0xff]
        %v2118 = vld [vmem:[#allocation10 + $0x10] sm:$0xff]
        %v2119 = vld [vmem:[#allocation10 + $0x18] sm:$0xff]
        %v2120 = vld [vmem:[#allocation10 + $0x20] sm:$0xff]
        %v2121 = vld [vmem:[#allocation10 + $0x28] sm:$0xff]
        %v2122 = vld [vmem:[#allocation10 + $0x30] sm:$0xff]
        %v2123 = vld [vmem:[#allocation10 + $0x38] sm:$0xff]
        %v2124 = vld [vmem:[#allocation10 + $0x40] sm:$0xff]
        %v2125 = vld [vmem:[#allocation10 + $0x48] sm:$0xff]
        %v2126 = vld [vmem:[#allocation10 + $0x50] sm:$0xff]
        %v2127 = vld [vmem:[#allocation10 + $0x58] sm:$0xff]
        %v2128 = vld [vmem:[#allocation10 + $0x60] sm:$0xff]
        %v2129 = vld [vmem:[#allocation10 + $0x68] sm:$0xff]
        %v2130 = vld [vmem:[#allocation10 + $0x70] sm:$0xff]
        %v2131 = vld [vmem:[#allocation10 + $0x78] sm:$0xff]
        %v2132 = vld [vmem:[#allocation10 + $0x80] sm:$0xff]
        %v2133 = vld [vmem:[#allocation10 + $0x88] sm:$0xff]
        %v2134 = vld [vmem:[#allocation10 + $0x90] sm:$0xff]
        %v2135 = vld [vmem:[#allocation10 + $0x98] sm:$0xff]
        %v2136 = vld [vmem:[#allocation10 + $0xa0] sm:$0xff]
        %v2137 = vld [vmem:[#allocation10 + $0xa8] sm:$0xff]
        %v2138 = vld [vmem:[#allocation10 + $0xb0] sm:$0xff]
        %v2139 = vld [vmem:[#allocation10 + $0xb8] sm:$0xff]
        %v2140 = vld [vmem:[#allocation10 + $0xc0] sm:$0xff]
        %v2141 = vld [vmem:[#allocation10 + $0xc8] sm:$0xff]
        %v2142 = vld [vmem:[#allocation10 + $0xd0] sm:$0xff]
        %v2143 = vld [vmem:[#allocation10 + $0xd8] sm:$0xff]
        %v2144 = vld [vmem:[#allocation10 + $0xe0] sm:$0xff]
        %v2145 = vld [vmem:[#allocation10 + $0xe8] sm:$0xff]
        %v2146 = vld [vmem:[#allocation10 + $0xf0] sm:$0xff]
        %v2147 = vld [vmem:[#allocation10 + $0xf8] sm:$0xff]
        %v2148 = vld [vmem:[%s12] sm:$0x3]
        %v2150 = vlaneseq
        %v2151 = vshrl.u32 %v2150, 7
        %v2152 = vsub.s32 0, %v2151
        %v2153 = vrot.slane %v2148, %v2152
        %v2154 = vlaneseq
        %v2155 = vshrl.u32 %v2154, 7
        %v2156 = vsub.s32 1, %v2155
        %v2157 = vrot.slane %v2148, %v2156
        %v2192 = vunpack.c.l.b16 %v2116
        %v2193 = vunpack.c.h.b16 %v2116
        %v2194 = vunpack.c.l.b16 %v2117
        %v2195 = vunpack.c.h.b16 %v2117
        %v2196 = vunpack.c.l.b16 %v2118
        %v2197 = vunpack.c.h.b16 %v2118
        %v2198 = vunpack.c.l.b16 %v2119
        %v2199 = vunpack.c.h.b16 %v2119
        %v2200 = vunpack.c.l.b16 %v2120
        %v2201 = vunpack.c.h.b16 %v2120
        %v2202 = vunpack.c.l.b16 %v2121
        %v2203 = vunpack.c.h.b16 %v2121
        %v2204 = vunpack.c.l.b16 %v2122
        %v2205 = vunpack.c.h.b16 %v2122
        %v2206 = vunpack.c.l.b16 %v2123
        %v2207 = vunpack.c.h.b16 %v2123
        %v2208 = vunpack.c.l.b16 %v2124
        %v2209 = vunpack.c.h.b16 %v2124
        %v2210 = vunpack.c.l.b16 %v2125
        %v2211 = vunpack.c.h.b16 %v2125
        %v2212 = vunpack.c.l.b16 %v2126
        %v2213 = vunpack.c.h.b16 %v2126
        %v2214 = vunpack.c.l.b16 %v2127
        %v2215 = vunpack.c.h.b16 %v2127
        %v2216 = vunpack.c.l.b16 %v2128
        %v2217 = vunpack.c.h.b16 %v2128
        %v2218 = vunpack.c.l.b16 %v2129
        %v2219 = vunpack.c.h.b16 %v2129
        %v2220 = vunpack.c.l.b16 %v2130
        %v2221 = vunpack.c.h.b16 %v2130
        %v2222 = vunpack.c.l.b16 %v2131
        %v2223 = vunpack.c.h.b16 %v2131
        %v2224 = vunpack.c.l.b16 %v2132
        %v2225 = vunpack.c.h.b16 %v2132
        %v2226 = vunpack.c.l.b16 %v2133
        %v2227 = vunpack.c.h.b16 %v2133
        %v2228 = vunpack.c.l.b16 %v2134
        %v2229 = vunpack.c.h.b16 %v2134
        %v2230 = vunpack.c.l.b16 %v2135
        %v2231 = vunpack.c.h.b16 %v2135
        %v2232 = vunpack.c.l.b16 %v2136
        %v2233 = vunpack.c.h.b16 %v2136
        %v2234 = vunpack.c.l.b16 %v2137
        %v2235 = vunpack.c.h.b16 %v2137
        %v2236 = vunpack.c.l.b16 %v2138
        %v2237 = vunpack.c.h.b16 %v2138
        %v2238 = vunpack.c.l.b16 %v2139
        %v2239 = vunpack.c.h.b16 %v2139
        %v2240 = vunpack.c.l.b16 %v2140
        %v2241 = vunpack.c.h.b16 %v2140
        %v2242 = vunpack.c.l.b16 %v2141
        %v2243 = vunpack.c.h.b16 %v2141
        %v2244 = vunpack.c.l.b16 %v2142
        %v2245 = vunpack.c.h.b16 %v2142
        %v2246 = vunpack.c.l.b16 %v2143
        %v2247 = vunpack.c.h.b16 %v2143
        %v2248 = vunpack.c.l.b16 %v2144
        %v2249 = vunpack.c.h.b16 %v2144
        %v2250 = vunpack.c.l.b16 %v2145
        %v2251 = vunpack.c.h.b16 %v2145
        %v2252 = vunpack.c.l.b16 %v2146
        %v2253 = vunpack.c.h.b16 %v2146
        %v2254 = vunpack.c.l.b16 %v2147
        %v2255 = vunpack.c.h.b16 %v2147
        %v2256 = vpack.c.b16 %v2194, %v2192
        %v2257 = vpack.c.b16 %v2195, %v2193
        %v2258 = vpack.c.b16 %v2198, %v2196
        %v2259 = vpack.c.b16 %v2199, %v2197
        %v2260 = vpack.c.b16 %v2202, %v2200
        %v2261 = vpack.c.b16 %v2203, %v2201
        %v2262 = vpack.c.b16 %v2206, %v2204
        %v2263 = vpack.c.b16 %v2207, %v2205
        %v2264 = vpack.c.b16 %v2210, %v2208
        %v2265 = vpack.c.b16 %v2211, %v2209
        %v2266 = vpack.c.b16 %v2214, %v2212
        %v2267 = vpack.c.b16 %v2215, %v2213
        %v2268 = vpack.c.b16 %v2218, %v2216
        %v2269 = vpack.c.b16 %v2219, %v2217
        %v2270 = vpack.c.b16 %v2222, %v2220
        %v2271 = vpack.c.b16 %v2223, %v2221
        %v2272 = vpack.c.b16 %v2226, %v2224
        %v2273 = vpack.c.b16 %v2227, %v2225
        %v2274 = vpack.c.b16 %v2230, %v2228
        %v2275 = vpack.c.b16 %v2231, %v2229
        %v2276 = vpack.c.b16 %v2234, %v2232
        %v2277 = vpack.c.b16 %v2235, %v2233
        %v2278 = vpack.c.b16 %v2238, %v2236
        %v2279 = vpack.c.b16 %v2239, %v2237
        %v2280 = vpack.c.b16 %v2242, %v2240
        %v2281 = vpack.c.b16 %v2243, %v2241
        %v2282 = vpack.c.b16 %v2246, %v2244
        %v2283 = vpack.c.b16 %v2247, %v2245
        %v2284 = vpack.c.b16 %v2250, %v2248
        %v2285 = vpack.c.b16 %v2251, %v2249
        %v2286 = vpack.c.b16 %v2254, %v2252
        %v2287 = vpack.c.b16 %v2255, %v2253
        %2320 = vmatprep.subr.bf16.mxu0 %v2271
        %2321 = vmatpush1.bf16.msra.mxu0 %v2270
        %2322 = vmatprep.subr.bf16.mxu0 %v2269
        %2323 = vmatpush1.bf16.msra.mxu0 %v2268
        %2324 = vmatprep.subr.bf16.mxu0 %v2267
        %2325 = vmatpush1.bf16.msra.mxu0 %v2266
        %2326 = vmatprep.subr.bf16.mxu0 %v2265
        %2327 = vmatpush1.bf16.msra.mxu0 %v2264
        %2328 = vmatprep.subr.bf16.mxu0 %v2263
        %2329 = vmatpush1.bf16.msra.mxu0 %v2262
        %2330 = vmatprep.subr.bf16.mxu0 %v2261
        %2331 = vmatpush1.bf16.msra.mxu0 %v2260
        %2332 = vmatprep.subr.bf16.mxu0 %v2259
        %2333 = vmatpush1.bf16.msra.mxu0 %v2258
        %2334 = vmatprep.subr.bf16.mxu0 %v2257
        %2335 = vmatpush1.bf16.msra.mxu0 %v2256
        %2336 = vmatprep.subr.bf16.mxu0 %v2287
        %2337 = vmatpush2.bf16.msra.mxu0 %v2286
        %2338 = vmatprep.subr.bf16.mxu0 %v2285
        %2339 = vmatpush2.bf16.msra.mxu0 %v2284
        %2340 = vmatprep.subr.bf16.mxu0 %v2283
        %2341 = vmatpush2.bf16.msra.mxu0 %v2282
        %2342 = vmatprep.subr.bf16.mxu0 %v2281
        %2343 = vmatpush2.bf16.msra.mxu0 %v2280
        %2344 = vmatprep.subr.bf16.mxu0 %v2279
        %2345 = vmatpush2.bf16.msra.mxu0 %v2278
        %2346 = vmatprep.subr.bf16.mxu0 %v2277
        %2347 = vmatpush2.bf16.msra.mxu0 %v2276
        %2348 = vmatprep.subr.bf16.mxu0 %v2275
        %2349 = vmatpush2.bf16.msra.mxu0 %v2274
        %2350 = vmatprep.subr.bf16.mxu0 %v2273
        %2351 = vmatpush2.bf16.msra.mxu0 %v2272
        %2352 = vmatprep.mubr.bf16.mxu0 %v2109
        %2353 = vmatmul.mubr.bf16.gmra.mxu0 %v2108
        %v2354 = vpop.f32.mrf.mxu0
        %v2355 = vadd.f32 %v2153, %v2354
        %v2356 = vpop.f32.mrf.mxu0
        %v2357 = vadd.f32 %v2157, %v2356
        %v2358 = vpop.f32.mrf.mxu0
        %v2359 = vadd.f32 %v2153, %v2358
        %v2360 = vpop.f32.mrf.mxu0
        %v2361 = vadd.f32 %v2157, %v2360
        %2362 = vmatprep.mubr.bf16.mxu0 %v2111
        %2363 = vmatmul.mubr.bf16.gmra.mxu0 %v2110
        %v2364 = vpop.f32.mrf.mxu0
        %v2365 = vadd.f32 %v2153, %v2364
        %v2366 = vpop.f32.mrf.mxu0
        %v2367 = vadd.f32 %v2157, %v2366
        %v2368 = vpop.f32.mrf.mxu0
        %v2369 = vadd.f32 %v2153, %v2368
        %v2370 = vpop.f32.mrf.mxu0
        %v2371 = vadd.f32 %v2157, %v2370
        %2372 = vmatprep.mubr.bf16.mxu0 %v2113
        %2373 = vmatmul.mubr.bf16.gmra.mxu0 %v2112
        %v2374 = vpop.f32.mrf.mxu0
        %v2375 = vadd.f32 %v2153, %v2374
        %v2376 = vpop.f32.mrf.mxu0
        %v2377 = vadd.f32 %v2157, %v2376
        %v2378 = vpop.f32.mrf.mxu0
        %v2379 = vadd.f32 %v2153, %v2378
        %v2380 = vpop.f32.mrf.mxu0
        %v2381 = vadd.f32 %v2157, %v2380
        %2382 = vmatprep.mubr.bf16.mxu0 %v2115
        %2383 = vmatmul.mubr.bf16.gmra.mxu0 %v2114
        %v2384 = vpop.f32.mrf.mxu0
        %v2385 = vadd.f32 %v2153, %v2384
        %v2386 = vpop.f32.mrf.mxu0
        %v2387 = vadd.f32 %v2157, %v2386
        %v2388 = vpop.f32.mrf.mxu0
        %v2389 = vadd.f32 %v2153, %v2388
        %v2390 = vpop.f32.mrf.mxu0
        %v2391 = vadd.f32 %v2157, %v2390
        %2392 = vdwg.mxu0
        %v2393 = vadd.f32 %v2355, %v866
        %v2394 = vadd.f32 %v2357, %v868
        %v2395 = vadd.f32 %v2359, %v870
        %v2396 = vadd.f32 %v2361, %v872
        %v2397 = vadd.f32 %v2365, %v876
        %v2398 = vadd.f32 %v2367, %v878
        %v2399 = vadd.f32 %v2369, %v880
        %v2400 = vadd.f32 %v2371, %v882
        %v2401 = vadd.f32 %v2375, %v886
        %v2402 = vadd.f32 %v2377, %v888
        %v2403 = vadd.f32 %v2379, %v890
        %v2404 = vadd.f32 %v2381, %v892
        %v2405 = vadd.f32 %v2385, %v896
        %v2406 = vadd.f32 %v2387, %v898
        %v2407 = vadd.f32 %v2389, %v900
        %v2408 = vadd.f32 %v2391, %v902
        %v2409 = vadd.f32 %v2393, %v2394
        %v2410 = vadd.f32 %v2395, %v2396
        %v2411 = vadd.f32 %v2397, %v2398
        %v2412 = vadd.f32 %v2399, %v2400
        %v2413 = vadd.f32 %v2401, %v2402
        %v2414 = vadd.f32 %v2403, %v2404
        %v2415 = vadd.f32 %v2405, %v2406
        %v2416 = vadd.f32 %v2407, %v2408
        %2417 = vst [vmem:[%s554] sm:$0xff] %v2409
        %2418 = vst [vmem:[%s554 + $0x8] sm:$0xff] %v2410
        %2419 = vst [vmem:[%s554 + $0x10] sm:$0xff] %v2411
        %2420 = vst [vmem:[%s554 + $0x18] sm:$0xff] %v2412
        %2421 = vst [vmem:[%s554 + $0x20] sm:$0xff] %v2413
        %2422 = vst [vmem:[%s554 + $0x28] sm:$0xff] %v2414
        %2423 = vst [vmem:[%s554 + $0x30] sm:$0xff] %v2415
        %2424 = vst [vmem:[%s554 + $0x38] sm:$0xff] %v2416
        %2425 = vst [vmem:[%s561] sm:$0xff] %v2394
        %2426 = vst [vmem:[%s561 + $0x8] sm:$0xff] %v2396
        %2427 = vst [vmem:[%s561 + $0x10] sm:$0xff] %v2398
        %2428 = vst [vmem:[%s561 + $0x18] sm:$0xff] %v2400
        %2429 = vst [vmem:[%s561 + $0x20] sm:$0xff] %v2402
        %2430 = vst [vmem:[%s561 + $0x28] sm:$0xff] %v2404
        %2431 = vst [vmem:[%s561 + $0x30] sm:$0xff] %v2406
        %2432 = vst [vmem:[%s561 + $0x38] sm:$0xff] %v2408
        %s2433 = sand.u32 %s326, 1
        %s2434 = scalar_lea.sflag [#allocation4], %s2433
        %s2435 = sand.u32 %s326, 1
        %s2436 = smul.addr %s2435, 64
        %s2437 = scalar_lea.vmem [#allocation11], %s2436
        %s2438 = sand.u32 %s352, 1
        %s2439 = scalar_lea.sflag [#allocation13], %s2438
        %s2440 = sand.u32 %s352, 1
        %s2441 = smul.addr %s2440, 64
        %s2442 = scalar_lea.vmem [#allocation12], %s2441
        // Predicated region
        $region93: #{tpu_custom_call.1} parent=71 // pred_check
          %p2443 = pneg %p336
        $region94: #{tpu_custom_call.1} parent=71 // pred_check_branch
          %2445 = sbr.rel (%p2443) target = $region96
        $region95: #{tpu_custom_call.1} parent=71 // pred_region
          %s2446 = smul.u32 8, %s35
          %s2448 = ssub.s32 1024, 1024
          %2449 = vsyncadd %s2434, %s2448
          %s2450 = smul.addr %s2446, 128
          %s2451 = scalar_lea.hbm %s13, %s2450
          %s2452 = sshll.u32 %s2437, 4
          %s2453 = int_to_ptr.vmem [resolvable:$true] %s2452
          %2458 = dma.vmem_to_hbm [thread:$0]  %s2453, 1024, %s2451, %s2434, 128, 128, 8
        $region96: #{tpu_custom_call.1} parent=71 // pred_fallthru
          _
        // Predicated region
        $region97: #{tpu_custom_call.1} parent=71 // pred_check
          %p2459 = pneg %p362
        $region98: #{tpu_custom_call.1} parent=71 // pred_check_branch
          %2461 = sbr.rel (%p2459) target = $region100
        $region99: #{tpu_custom_call.1} parent=71 // pred_region
          %s2462 = smul.u32 8, %s35
          %s2464 = ssub.s32 1024, 1024
          %2465 = vsyncadd %s2439, %s2464
          %s2466 = smul.addr %s2462, 128
          %s2467 = scalar_lea.hbm %s14, %s2466
          %s2468 = sshll.u32 %s2442, 4
          %s2469 = int_to_ptr.vmem [resolvable:$true] %s2468
          %2474 = dma.vmem_to_hbm [thread:$0]  %s2469, 1024, %s2467, %s2439, 128, 128, 8
        $region100: #{tpu_custom_call.1} parent=71 // pred_fallthru
          _
      $region72: #{tpu_custom_call.1} parent=5 // pred_fallthru
        _
      %p2475 = scmp.le.s32.totalorder 2, %s30
      // Predicated region
      $region101: #{tpu_custom_call.1} parent=5 // pred_check
        %p2476 = pneg %p2475
      $region102: #{tpu_custom_call.1} parent=5 // pred_check_branch
        %2478 = sbr.rel (%p2476) target = $region104
      $region103: #{tpu_custom_call.1} parent=5 // pred_region
        %s2479 = ssub.s32 %s30, 2
        // Predicated region
        $region105: #{tpu_custom_call.1} parent=103 // pred_check
          %p2480 = pneg %p342
        $region106: #{tpu_custom_call.1} parent=103 // pred_check_branch
          %2482 = sbr.rel (%p2480) target = $region108
        $region107: #{tpu_custom_call.1} parent=103 // pred_region
          %s2483 = sand.u32 %s327, 1
          %s2484 = scalar_lea.sflag [#allocation4], %s2483
          %s2485 = sand.u32 %s327, 1
          %s2486 = smul.addr %s2485, 64
          %s2487 = scalar_lea.vmem [#allocation11], %s2486
          %2488 = dma.done %s2484, 1024
        $region108: #{tpu_custom_call.1} parent=103 // pred_fallthru
          _
        // Predicated region
        $region109: #{tpu_custom_call.1} parent=103 // pred_check
          %p2489 = pneg %p368
        $region110: #{tpu_custom_call.1} parent=103 // pred_check_branch
          %2491 = sbr.rel (%p2489) target = $region112
        $region111: #{tpu_custom_call.1} parent=103 // pred_region
          %s2492 = sand.u32 %s353, 1
          %s2493 = scalar_lea.sflag [#allocation13], %s2492
          %s2494 = sand.u32 %s353, 1
          %s2495 = smul.addr %s2494, 64
          %s2496 = scalar_lea.vmem [#allocation12], %s2495
          %2497 = dma.done %s2493, 1024
        $region112: #{tpu_custom_call.1} parent=103 // pred_fallthru
          _
      $region104: #{tpu_custom_call.1} parent=5 // pred_fallthru
        _
    $region6: #{tpu_custom_call.1} parent=1 // loop_footer
      %s34 = sadd.s32 1, %s30
    $region7: #{tpu_custom_call.1} parent=1 // loop_footer_branch
      %29 = sbr.rel target = $region3
    $region8: #{tpu_custom_call.1} parent=1 // loop_exit
      _
    %2498 = vsyncpa [#allocation3], 1
    %s2499 = scalar_lea.sflag [#allocation3], 1
    %2500 = vsyncpa %s2499, 1
    %2501 = vsyncpa [#allocation6], 1
    %2502 = vsyncpa [#allocation9], 1
    %2503 = vsyncpa [#allocation4], 1
    %s2504 = scalar_lea.sflag [#allocation4], 1
    %2505 = vsyncpa %s2504, 1
    %2506 = vsyncpa [#allocation13], 1
    %s2507 = scalar_lea.sflag [#allocation13], 1
    %2508 = vsyncpa %s2507, 1

</llo_original>
